<compile_context>
chip_gen: v7x
topology: tpu7x:2x2x1
jax: 0.10.0
libtpu: 0.0.40
codegen_flags: <defaults>
</compile_context>

<pallas_src>
import functools

import jax
import jax.numpy as jnp
from jax.experimental import pallas as pl
from jax.experimental.pallas import tpu as pltpu


def _layernorm(x, g, b, eps):
    mu = jnp.mean(x, axis=-1, keepdims=True)
    xc = x - mu
    var = jnp.mean(xc * xc, axis=-1, keepdims=True)
    return xc * jax.lax.rsqrt(var + eps) * g + b


def _rechead_kernel(*refs, tb, seq, heads, dh, eps, has_qkv_bias):
    refs = list(refs)
    x_ref, g1_ref, b1_ref, wq_ref, wk_ref, wv_ref = refs[:6]
    i = 6
    if has_qkv_bias:
        bq_ref, bk_ref, bv_ref = refs[6:9]
        i = 9
    (wproj_ref, bproj_ref, g2_ref, b2_ref, w1_ref, bf1_ref,
     w2_ref, bf2_ref, g3_ref, b3_ref, wct_ref, bct_ref, o_ref) = refs[i:i + 13]

    f32 = jnp.float32
    bf16 = jnp.bfloat16
    x = x_ref[...].astype(f32)                                  # (TM, C) residual path in f32

    # ---- norm1 + multi-head self-attention + residual --------------------
    h = _layernorm(x, g1_ref[...], b1_ref[...], eps).astype(bf16)
    q = jnp.dot(h, wq_ref[...], preferred_element_type=f32)    # attention scale folded into Wq
    k = jnp.dot(h, wk_ref[...], preferred_element_type=f32)
    v = jnp.dot(h, wv_ref[...], preferred_element_type=f32)
    if has_qkv_bias:
        q = q + bq_ref[...]
        k = k + bk_ref[...]
        v = v + bv_ref[...]
    q = q.astype(bf16)
    k = k.astype(bf16)
    v = v.astype(bf16)

    ctx = []                                                    # per-head contexts, merged in-vreg
    for hh in range(heads):                                     # static unrolled, heads is tiny
        lo = hh * dh
        q3 = q[:, lo:lo + dh].reshape(tb, seq, dh)
        k3 = k[:, lo:lo + dh].reshape(tb, seq, dh)
        v3 = v[:, lo:lo + dh].reshape(tb, seq, dh)
        s = jnp.einsum('bnd,bmd->bnm', q3, k3, preferred_element_type=f32)
        s = s - jnp.max(s, axis=-1, keepdims=True)
        e = jnp.exp(s)                                          # f32 softmax math
        p = e * pl.reciprocal(jnp.sum(e, axis=-1, keepdims=True), approx=True)
        c3 = jnp.einsum('bnm,bmd->bnd', p.astype(bf16), v3, preferred_element_type=f32)
        ctx.append(c3.reshape(tb * seq, dh))
    ctx = jnp.concatenate(ctx, axis=-1)                         # (TM, C), head-major merge
    y = jnp.dot(ctx.astype(bf16), wproj_ref[...], preferred_element_type=f32) + bproj_ref[...]
    x = x + y

    # ---- norm2 + MLP (ReLU) + residual ------------------------------------
    z = _layernorm(x, g2_ref[...], b2_ref[...], eps).astype(bf16)
    hdn = jnp.dot(z, w1_ref[...], preferred_element_type=f32) + bf1_ref[...]
    hdn = jnp.maximum(hdn, 0.0).astype(bf16)
    m = jnp.dot(hdn, w2_ref[...], preferred_element_type=f32) + bf2_ref[...]
    x = x + m

    # ---- norm3 + ConvTranspose1d (kernel==stride) as a lane-dense matmul ----
    x = _layernorm(x, g3_ref[...], b3_ref[...], eps).astype(bf16)
    out = jnp.dot(x, wct_ref[...], preferred_element_type=f32) + bct_ref[...]
    o_ref[...] = out.astype(o_ref.dtype)


def _pick_tile_b(B, N, C, Hm, P, budget_bytes):
    """Largest divisor of B whose (tile_b*N)-row working set fits the budget, sublane aligned."""
    per_batch = 4 * N * (6 * C + Hm + P) * 2            # rough f32 working set / batch, 2x margin
    divisors = [d for d in range(1, B + 1) if B % d == 0]
    aligned = [d for d in divisors if (d * N) % 8 == 0 or d == B]
    fitting = [d for d in aligned if d * per_batch <= budget_bytes]
    if fitting:
        return fitting[-1]
    return aligned[0]


def rechead_forward(x, params, *, num_heads, patch_size, eps=1e-5, tile_b=None,
                    act_vmem_budget=4 << 20):
    """
    x: (B, N, C) float32 tokens.
    params (PyTorch layouts):
      norm{1,2,3}_w/b: (C,)
      qkv_w: (3C, C)   qkv_b: (3C,) or None      proj_w: (C, C)   proj_b: (C,)
      fc1_w: (Hm, C)   fc1_b: (Hm,)              fc2_w: (C, Hm)   fc2_b: (C,)
      convT_w: (C, in_chans, p)                  convT_b: (in_chans,)
    Returns (B, N*p, in_chans).  Implements depth=1 (module default); Dropout/DropPath
    are identity because RECHead constructs its Block with drop=0.0 and drop_path=0.0.
    """
    B, N, C = x.shape
    Hm = params['fc1_w'].shape[0]
    Cc, in_chans, p = params['convT_w'].shape
    assert Cc == C and p == patch_size and C % num_heads == 0
    dh = C // num_heads
    scale = float(dh ** -0.5)
    P = p * in_chans
    M = B * N
    f32 = jnp.float32
    bf16 = jnp.bfloat16
    row = lambda v: jnp.asarray(v, f32).reshape(1, -1)

    if tile_b is None:
        tile_b = _pick_tile_b(B, N, C, Hm, P, act_vmem_budget)
    assert B % tile_b == 0 and ((tile_b * N) % 8 == 0 or tile_b == B)
    TM = tile_b * N
    steps = B // tile_b

    # Activations: pure reshape, batch folded into the matmul M dimension, kept f32
    # (the residual / LayerNorm path wants f32; matmul operands are cast in-kernel).
    x_f = jnp.asarray(x, f32).reshape(M, C)

    # Parameters: all transposes / splits / scaling happen on tiny constants.
    qkv_w = jnp.asarray(params['qkv_w'], f32)                   # (3C, C)
    w_q = (qkv_w[:C, :].T * scale).astype(bf16)                 # (C, C), scale folded in
    w_k = qkv_w[C:2 * C, :].T.astype(bf16)
    w_v = qkv_w[2 * C:, :].T.astype(bf16)
    qkv_b = params.get('qkv_b')
    has_qkv_bias = qkv_b is not None
    bias_args = ()
    if has_qkv_bias:
        qb = jnp.asarray(qkv_b, f32)
        bias_args = ((qb[:C] * scale).reshape(1, -1),
                     qb[C:2 * C].reshape(1, -1),
                     qb[2 * C:].reshape(1, -1))
    w_proj = jnp.asarray(params['proj_w'], f32).T.astype(bf16)  # (C, C)
    w_fc1 = jnp.asarray(params['fc1_w'], f32).T.astype(bf16)    # (C, Hm)
    w_fc2 = jnp.asarray(params['fc2_w'], f32).T.astype(bf16)    # (Hm, C)
    # ConvTranspose1d(C, in_chans, k=p, s=p): out[b, n*p+k, o] = sum_c x[b,n,c]*W[c,o,k] + b[o]
    w_ct = jnp.asarray(params['convT_w'], f32).transpose(0, 2, 1).reshape(C, P).astype(bf16)
    b_ct = jnp.tile(jnp.asarray(params['convT_b'], f32), (p,)).reshape(1, P)

    args = (x_f,
            row(params['norm1_w']), row(params['norm1_b']),
            w_q, w_k, w_v,
            *bias_args,
            w_proj, row(params['proj_b']),
            row(params['norm2_w']), row(params['norm2_b']),
            w_fc1, row(params['fc1_b']),
            w_fc2, row(params['fc2_b']),
            row(params['norm3_w']), row(params['norm3_b']),
            w_ct, b_ct)

    def resident(a):                                            # weights stay in VMEM across steps
        return pl.BlockSpec(a.shape, lambda i: (0,) * a.ndim)

    in_specs = [pl.BlockSpec((TM, C), lambda i: (i, 0))]
    in_specs += [resident(a) for a in args[1:]]
    out_spec = pl.BlockSpec((TM, P), lambda i: (i, 0))

    # Right-sized VMEM limit from actual tile arithmetic (with margin + 4 MiB floor).
    weight_bytes = sum(int(a.size) * a.dtype.itemsize for a in args[1:])
    act_bytes = 2 * 4 * TM * (C + P)                            # double-buffered f32 in/out tiles
    scratch_bytes = 4 * TM * (6 * C + Hm) + 4 * tile_b * num_heads * N * N
    vmem_limit = int(max(4 << 20, 2 * (2 * weight_bytes + act_bytes + scratch_bytes)))

    flops = (6 * M * C * C                      # q, k, v
             + 4 * B * num_heads * N * N * dh   # attention matmuls
             + 2 * M * C * C                    # proj
             + 4 * M * C * Hm                   # mlp
             + 2 * M * C * P)                   # conv-transpose matmul
    bytes_accessed = weight_bytes + 4 * M * (C + P)

    kernel = functools.partial(_rechead_kernel, tb=tile_b, seq=N, heads=num_heads,
                               dh=dh, eps=eps, has_qkv_bias=has_qkv_bias)

    out_flat = pl.pallas_call(
        kernel,
        out_shape=jax.ShapeDtypeStruct((M, P), x.dtype),
        grid_spec=pltpu.PrefetchScalarGridSpec(
            num_scalar_prefetch=0,
            grid=(steps,),
            in_specs=in_specs,
            out_specs=out_spec,
        ),
        compiler_params=pltpu.CompilerParams(
            dimension_semantics=("parallel",),                  # shards batch tiles across TCs
            vmem_limit_bytes=vmem_limit,
        ),
        cost_estimate=pl.CostEstimate(
            flops=int(flops),
            transcendentals=int(B * num_heads * N * N),
            bytes_accessed=int(bytes_accessed),
        ),
    )(*args)

    # (B*N, p*in_chans) -> (B, N*p, in_chans): contiguous reshape, no transpose.
    return out_flat.reshape(B, N * p, in_chans)


def rechead_reference(x, params, *, num_heads, patch_size, eps=1e-5):
    """Plain-JAX f32 reference mirroring the PyTorch RECHead forward."""
    B, N, C = x.shape

    def ln(v, g, b):
        mu = v.mean(-1, keepdims=True)
        var = ((v - mu) ** 2).mean(-1, keepdims=True)
        return (v - mu) / jnp.sqrt(var + eps) * g + b

    h = ln(x, params['norm1_w'], params['norm1_b'])
    qkv = h @ params['qkv_w'].T
    if params.get('qkv_b') is not None:
        qkv = qkv + params['qkv_b']
    dh = C // num_heads
    qkv = qkv.reshape(B, N, 3, num_heads, dh).transpose(2, 0, 3, 1, 4)
    q, k, v = qkv[0], qkv[1], qkv[2]
    attn = jax.nn.softmax((q @ jnp.swapaxes(k, -1, -2)) * (dh ** -0.5), axis=-1)
    y = (attn @ v).transpose(0, 2, 1, 3).reshape(B, N, C)
    y = y @ params['proj_w'].T + params['proj_b']
    x = x + y
    z = ln(x, params['norm2_w'], params['norm2_b'])
    m = jnp.maximum(z @ params['fc1_w'].T + params['fc1_b'], 0.0)
    m = m @ params['fc2_w'].T + params['fc2_b']
    x = x + m
    x = ln(x, params['norm3_w'], params['norm3_b'])
    w = params['convT_w']                                       # (C, in_chans, p)
    ic, p = w.shape[1], w.shape[2]
    out = jnp.einsum('bnc,cok->bnko', x, w).reshape(B, N * p, ic) + params['convT_b']
    return out


if __name__ == "__main__":
    # Small shapes consistent with the module, 128/8-aligned:
    # embed_dim=128, heads=4 (head_dim=32), mlp_hidden=256, patch_size*in_chans=128.
    B, N = 2, 16
    embed_dim, num_heads, mlp_hidden = 128, 4, 256
    patch_size, in_chans = 8, 16

    key = jax.random.PRNGKey(0)
    ks = jax.random.split(key, 16)
    nrm = lambda k, shp, s=0.02: jax.random.normal(k, shp, dtype=jnp.float32) * s

    x = jax.random.normal(ks[0], (B, N, embed_dim), dtype=jnp.float32)
    params = {
        'norm1_w': 1.0 + nrm(ks[1], (embed_dim,), 0.1),
        'norm1_b': nrm(ks[2], (embed_dim,), 0.1),
        'qkv_w': nrm(ks[3], (3 * embed_dim, embed_dim)),
        'qkv_b': None,                                          # qkv_bias=False (module default)
        'proj_w': nrm(ks[4], (embed_dim, embed_dim)),
        'proj_b': nrm(ks[5], (embed_dim,)),
        'norm2_w': 1.0 + nrm(ks[6], (embed_dim,), 0.1),
        'norm2_b': nrm(ks[7], (embed_dim,), 0.1),
        'fc1_w': nrm(ks[8], (mlp_hidden, embed_dim)),
        'fc1_b': nrm(ks[9], (mlp_hidden,)),
        'fc2_w': nrm(ks[10], (embed_dim, mlp_hidden)),
        'fc2_b': nrm(ks[11], (embed_dim,)),
        'norm3_w': 1.0 + nrm(ks[12], (embed_dim,), 0.1),
        'norm3_b': nrm(ks[13], (embed_dim,), 0.1),
        'convT_w': nrm(ks[14], (embed_dim, in_chans, patch_size)),
        'convT_b': nrm(ks[15], (in_chans,)),
    }

    ref = rechead_reference(x, params, num_heads=num_heads, patch_size=patch_size)

    # 1) default tiling (whole batch in one step at this toy size)
    out = rechead_forward(x, params, num_heads=num_heads, patch_size=patch_size)
    out = jax.block_until_ready(out)
    assert out.shape == (B, N * patch_size, in_chans)
    # bf16 matmul operands / f32 accumulation vs an all-f32 reference.
    assert jnp.allclose(out, ref, atol=2e-2, rtol=2e-2), float(jnp.max(jnp.abs(out - ref)))

    # 2) forced tile_b=1 to exercise the multi-step pipelined grid path.
    out2 = rechead_forward(x, params, num_heads=num_heads, patch_size=patch_size, tile_b=1)
    out2 = jax.block_until_ready(out2)
    assert jnp.allclose(out2, ref, atol=2e-2, rtol=2e-2), float(jnp.max(jnp.abs(out2 - ref)))

    print("KERNEL_OK")
</pallas_src>

<mosaic_0001>
module attributes {stable_mosaic.version = 11 : i64} {
  func.func @_rechead_kernel(%arg0: i32, %arg1: memref<32x128xf32, #tpu.memory_space<vmem>>, %arg2: memref<1x128xf32, #tpu.memory_space<vmem>>, %arg3: memref<1x128xf32, #tpu.memory_space<vmem>>, %arg4: memref<128x128xbf16, #tpu.memory_space<vmem>>, %arg5: memref<128x128xbf16, #tpu.memory_space<vmem>>, %arg6: memref<128x128xbf16, #tpu.memory_space<vmem>>, %arg7: memref<128x128xbf16, #tpu.memory_space<vmem>>, %arg8: memref<1x128xf32, #tpu.memory_space<vmem>>, %arg9: memref<1x128xf32, #tpu.memory_space<vmem>>, %arg10: memref<1x128xf32, #tpu.memory_space<vmem>>, %arg11: memref<128x256xbf16, #tpu.memory_space<vmem>>, %arg12: memref<1x256xf32, #tpu.memory_space<vmem>>, %arg13: memref<256x128xbf16, #tpu.memory_space<vmem>>, %arg14: memref<1x128xf32, #tpu.memory_space<vmem>>, %arg15: memref<1x128xf32, #tpu.memory_space<vmem>>, %arg16: memref<1x128xf32, #tpu.memory_space<vmem>>, %arg17: memref<128x128xbf16, #tpu.memory_space<vmem>>, %arg18: memref<1x128xf32, #tpu.memory_space<vmem>>, %arg19: memref<32x128xf32, #tpu.memory_space<vmem>>) attributes {dimension_semantics = [#tpu.dimension_semantics<parallel>], iteration_bounds = array<i64: 1>, scalar_prefetch = 0 : i64, scratch_operands = 0 : i64, tpu.core_type = #tpu.core_type<tc>, window_params = [{transform_indices = @transform_0, window_bounds = array<i64: 32, 128>}, {pipeline_mode = #tpu.pipeline_mode<synchronous>, transform_indices = @transform_1, window_bounds = array<i64: 1, 128>}, {pipeline_mode = #tpu.pipeline_mode<synchronous>, transform_indices = @transform_2, window_bounds = array<i64: 1, 128>}, {pipeline_mode = #tpu.pipeline_mode<synchronous>, transform_indices = @transform_3, window_bounds = array<i64: 128, 128>}, {pipeline_mode = #tpu.pipeline_mode<synchronous>, transform_indices = @transform_4, window_bounds = array<i64: 128, 128>}, {pipeline_mode = #tpu.pipeline_mode<synchronous>, transform_indices = @transform_5, window_bounds = array<i64: 128, 128>}, {pipeline_mode = #tpu.pipeline_mode<synchronous>, transform_indices = @transform_6, window_bounds = array<i64: 128, 128>}, {pipeline_mode = #tpu.pipeline_mode<synchronous>, transform_indices = @transform_7, window_bounds = array<i64: 1, 128>}, {pipeline_mode = #tpu.pipeline_mode<synchronous>, transform_indices = @transform_8, window_bounds = array<i64: 1, 128>}, {pipeline_mode = #tpu.pipeline_mode<synchronous>, transform_indices = @transform_9, window_bounds = array<i64: 1, 128>}, {pipeline_mode = #tpu.pipeline_mode<synchronous>, transform_indices = @transform_10, window_bounds = array<i64: 128, 256>}, {pipeline_mode = #tpu.pipeline_mode<synchronous>, transform_indices = @transform_11, window_bounds = array<i64: 1, 256>}, {pipeline_mode = #tpu.pipeline_mode<synchronous>, transform_indices = @transform_12, window_bounds = array<i64: 256, 128>}, {pipeline_mode = #tpu.pipeline_mode<synchronous>, transform_indices = @transform_13, window_bounds = array<i64: 1, 128>}, {pipeline_mode = #tpu.pipeline_mode<synchronous>, transform_indices = @transform_14, window_bounds = array<i64: 1, 128>}, {pipeline_mode = #tpu.pipeline_mode<synchronous>, transform_indices = @transform_15, window_bounds = array<i64: 1, 128>}, {pipeline_mode = #tpu.pipeline_mode<synchronous>, transform_indices = @transform_16, window_bounds = array<i64: 128, 128>}, {pipeline_mode = #tpu.pipeline_mode<synchronous>, transform_indices = @transform_17, window_bounds = array<i64: 1, 128>}, {transform_indices = @transform_18, window_bounds = array<i64: 32, 128>}]} {
    %c0 = arith.constant 0 : index
    %c0_0 = arith.constant 0 : index
    %0 = vector.load %arg1[%c0, %c0_0] : memref<32x128xf32, #tpu.memory_space<vmem>>, vector<32x128xf32>
    %c0_1 = arith.constant 0 : index
    %c0_2 = arith.constant 0 : index
    %1 = vector.load %arg2[%c0_1, %c0_2] : memref<1x128xf32, #tpu.memory_space<vmem>>, vector<1x128xf32>
    %c0_3 = arith.constant 0 : index
    %c0_4 = arith.constant 0 : index
    %2 = vector.load %arg3[%c0_3, %c0_4] : memref<1x128xf32, #tpu.memory_space<vmem>>, vector<1x128xf32>
    %cst = arith.constant dense<0.000000e+00> : vector<32xf32>
    %3 = vector.multi_reduction <add>, %0, %cst [1] : vector<32x128xf32> to vector<32xf32>
    %4 = vector.shape_cast %3 : vector<32xf32> to vector<32x1xf32>
    %cst_5 = arith.constant 1.280000e+02 : f32
    %5 = vector.broadcast %cst_5 : f32 to vector<32x1xf32>
    %6 = arith.divf %4, %5 : vector<32x1xf32>
    %7 = vector.broadcast %6 : vector<32x1xf32> to vector<32x128xf32>
    %8 = arith.subf %0, %7 : vector<32x128xf32>
    %9 = arith.mulf %8, %8 : vector<32x128xf32>
    %cst_6 = arith.constant dense<0.000000e+00> : vector<32xf32>
    %10 = vector.multi_reduction <add>, %9, %cst_6 [1] : vector<32x128xf32> to vector<32xf32>
    %11 = vector.shape_cast %10 : vector<32xf32> to vector<32x1xf32>
    %cst_7 = arith.constant 1.280000e+02 : f32
    %12 = vector.broadcast %cst_7 : f32 to vector<32x1xf32>
    %13 = arith.divf %11, %12 : vector<32x1xf32>
    %cst_8 = arith.constant 9.99999974E-6 : f32
    %14 = vector.broadcast %cst_8 : f32 to vector<32x1xf32>
    %15 = arith.addf %13, %14 : vector<32x1xf32>
    %16 = math.rsqrt %15 : vector<32x1xf32>
    %17 = vector.broadcast %16 : vector<32x1xf32> to vector<32x128xf32>
    %18 = arith.mulf %8, %17 : vector<32x128xf32>
    %19 = vector.broadcast %1 : vector<1x128xf32> to vector<32x128xf32>
    %20 = arith.mulf %18, %19 : vector<32x128xf32>
    %21 = vector.broadcast %2 : vector<1x128xf32> to vector<32x128xf32>
    %22 = arith.addf %20, %21 : vector<32x128xf32>
    %23 = arith.truncf %22 : vector<32x128xf32> to vector<32x128xbf16>
    %c0_9 = arith.constant 0 : index
    %c0_10 = arith.constant 0 : index
    %24 = vector.load %arg4[%c0_9, %c0_10] : memref<128x128xbf16, #tpu.memory_space<vmem>>, vector<128x128xbf16>
    %cst_11 = arith.constant dense<0.000000e+00> : vector<32x128xf32>
    %25 = tpu.matmul %23, %24, %cst_11 {dimension_numbers = #tpu.dot_dimension_numbers<[1], [0], [0], [1], [0, 0, 1, 1], [], []>} : vector<32x128xbf16>, vector<128x128xbf16>, vector<32x128xf32> -> vector<32x128xf32>
    %c0_12 = arith.constant 0 : index
    %c0_13 = arith.constant 0 : index
    %26 = vector.load %arg5[%c0_12, %c0_13] : memref<128x128xbf16, #tpu.memory_space<vmem>>, vector<128x128xbf16>
    %cst_14 = arith.constant dense<0.000000e+00> : vector<32x128xf32>
    %27 = tpu.matmul %23, %26, %cst_14 {dimension_numbers = #tpu.dot_dimension_numbers<[1], [0], [0], [1], [0, 0, 1, 1], [], []>} : vector<32x128xbf16>, vector<128x128xbf16>, vector<32x128xf32> -> vector<32x128xf32>
    %c0_15 = arith.constant 0 : index
    %c0_16 = arith.constant 0 : index
    %28 = vector.load %arg6[%c0_15, %c0_16] : memref<128x128xbf16, #tpu.memory_space<vmem>>, vector<128x128xbf16>
    %cst_17 = arith.constant dense<0.000000e+00> : vector<32x128xf32>
    %29 = tpu.matmul %23, %28, %cst_17 {dimension_numbers = #tpu.dot_dimension_numbers<[1], [0], [0], [1], [0, 0, 1, 1], [], []>} : vector<32x128xbf16>, vector<128x128xbf16>, vector<32x128xf32> -> vector<32x128xf32>
    %30 = arith.truncf %25 : vector<32x128xf32> to vector<32x128xbf16>
    %31 = arith.truncf %27 : vector<32x128xf32> to vector<32x128xbf16>
    %32 = arith.truncf %29 : vector<32x128xf32> to vector<32x128xbf16>
    %33 = vector.extract_strided_slice %30 {offsets = [0, 0], sizes = [32, 32], strides = [1, 1]} : vector<32x128xbf16> to vector<32x32xbf16>
    %34 = vector.shape_cast %33 : vector<32x32xbf16> to vector<2x16x32xbf16>
    %35 = vector.extract_strided_slice %31 {offsets = [0, 0], sizes = [32, 32], strides = [1, 1]} : vector<32x128xbf16> to vector<32x32xbf16>
    %36 = vector.shape_cast %35 : vector<32x32xbf16> to vector<2x16x32xbf16>
    %37 = vector.extract_strided_slice %32 {offsets = [0, 0], sizes = [32, 32], strides = [1, 1]} : vector<32x128xbf16> to vector<32x32xbf16>
    %38 = vector.shape_cast %37 : vector<32x32xbf16> to vector<2x16x32xbf16>
    "tpu.trace_start"() <{level = 10 : i32, message = "bnd,bmd->bnm"}> : () -> ()
    %cst_18 = arith.constant dense<0.000000e+00> : vector<2x16x16xf32>
    %39 = tpu.matmul %34, %36, %cst_18 {dimension_numbers = #tpu.dot_dimension_numbers<[2], [2], [1], [1], [0, 0, 0, 1, 1, 1], [0], [0]>} : vector<2x16x32xbf16>, vector<2x16x32xbf16>, vector<2x16x16xf32> -> vector<2x16x16xf32>
    "tpu.trace_stop"() : () -> ()
    %cst_19 = arith.constant dense<0xFF800000> : vector<2x16xf32>
    %40 = vector.multi_reduction <maximumf>, %39, %cst_19 [2] : vector<2x16x16xf32> to vector<2x16xf32>
    %41 = vector.shape_cast %40 : vector<2x16xf32> to vector<2x16x1xf32>
    %42 = vector.broadcast %41 : vector<2x16x1xf32> to vector<2x16x16xf32>
    %43 = arith.subf %39, %42 : vector<2x16x16xf32>
    %44 = math.exp %43 : vector<2x16x16xf32>
    %cst_20 = arith.constant dense<0.000000e+00> : vector<2x16xf32>
    %45 = vector.multi_reduction <add>, %44, %cst_20 [2] : vector<2x16x16xf32> to vector<2x16xf32>
    %46 = vector.shape_cast %45 : vector<2x16xf32> to vector<2x16x1xf32>
    %47 = tpu.reciprocal %46 {approx = true} : vector<2x16x1xf32> -> vector<2x16x1xf32>
    %48 = vector.broadcast %47 : vector<2x16x1xf32> to vector<2x16x16xf32>
    %49 = arith.mulf %44, %48 : vector<2x16x16xf32>
    %50 = arith.truncf %49 : vector<2x16x16xf32> to vector<2x16x16xbf16>
    "tpu.trace_start"() <{level = 10 : i32, message = "bnm,bmd->bnd"}> : () -> ()
    %cst_21 = arith.constant dense<0.000000e+00> : vector<2x16x32xf32>
    %51 = tpu.matmul %50, %38, %cst_21 {dimension_numbers = #tpu.dot_dimension_numbers<[2], [1], [1], [2], [0, 0, 0, 1, 1, 2], [0], [0]>} : vector<2x16x16xbf16>, vector<2x16x32xbf16>, vector<2x16x32xf32> -> vector<2x16x32xf32>
    "tpu.trace_stop"() : () -> ()
    %52 = vector.shape_cast %51 : vector<2x16x32xf32> to vector<32x32xf32>
    %53 = vector.extract_strided_slice %30 {offsets = [0, 32], sizes = [32, 32], strides = [1, 1]} : vector<32x128xbf16> to vector<32x32xbf16>
    %54 = vector.shape_cast %53 : vector<32x32xbf16> to vector<2x16x32xbf16>
    %55 = vector.extract_strided_slice %31 {offsets = [0, 32], sizes = [32, 32], strides = [1, 1]} : vector<32x128xbf16> to vector<32x32xbf16>
    %56 = vector.shape_cast %55 : vector<32x32xbf16> to vector<2x16x32xbf16>
    %57 = vector.extract_strided_slice %32 {offsets = [0, 32], sizes = [32, 32], strides = [1, 1]} : vector<32x128xbf16> to vector<32x32xbf16>
    %58 = vector.shape_cast %57 : vector<32x32xbf16> to vector<2x16x32xbf16>
    "tpu.trace_start"() <{level = 10 : i32, message = "bnd,bmd->bnm"}> : () -> ()
    %cst_22 = arith.constant dense<0.000000e+00> : vector<2x16x16xf32>
    %59 = tpu.matmul %54, %56, %cst_22 {dimension_numbers = #tpu.dot_dimension_numbers<[2], [2], [1], [1], [0, 0, 0, 1, 1, 1], [0], [0]>} : vector<2x16x32xbf16>, vector<2x16x32xbf16>, vector<2x16x16xf32> -> vector<2x16x16xf32>
    "tpu.trace_stop"() : () -> ()
    %cst_23 = arith.constant dense<0xFF800000> : vector<2x16xf32>
    %60 = vector.multi_reduction <maximumf>, %59, %cst_23 [2] : vector<2x16x16xf32> to vector<2x16xf32>
    %61 = vector.shape_cast %60 : vector<2x16xf32> to vector<2x16x1xf32>
    %62 = vector.broadcast %61 : vector<2x16x1xf32> to vector<2x16x16xf32>
    %63 = arith.subf %59, %62 : vector<2x16x16xf32>
    %64 = math.exp %63 : vector<2x16x16xf32>
    %cst_24 = arith.constant dense<0.000000e+00> : vector<2x16xf32>
    %65 = vector.multi_reduction <add>, %64, %cst_24 [2] : vector<2x16x16xf32> to vector<2x16xf32>
    %66 = vector.shape_cast %65 : vector<2x16xf32> to vector<2x16x1xf32>
    %67 = tpu.reciprocal %66 {approx = true} : vector<2x16x1xf32> -> vector<2x16x1xf32>
    %68 = vector.broadcast %67 : vector<2x16x1xf32> to vector<2x16x16xf32>
    %69 = arith.mulf %64, %68 : vector<2x16x16xf32>
    %70 = arith.truncf %69 : vector<2x16x16xf32> to vector<2x16x16xbf16>
    "tpu.trace_start"() <{level = 10 : i32, message = "bnm,bmd->bnd"}> : () -> ()
    %cst_25 = arith.constant dense<0.000000e+00> : vector<2x16x32xf32>
    %71 = tpu.matmul %70, %58, %cst_25 {dimension_numbers = #tpu.dot_dimension_numbers<[2], [1], [1], [2], [0, 0, 0, 1, 1, 2], [0], [0]>} : vector<2x16x16xbf16>, vector<2x16x32xbf16>, vector<2x16x32xf32> -> vector<2x16x32xf32>
    "tpu.trace_stop"() : () -> ()
    %72 = vector.shape_cast %71 : vector<2x16x32xf32> to vector<32x32xf32>
    %73 = vector.extract_strided_slice %30 {offsets = [0, 64], sizes = [32, 32], strides = [1, 1]} : vector<32x128xbf16> to vector<32x32xbf16>
    %74 = vector.shape_cast %73 : vector<32x32xbf16> to vector<2x16x32xbf16>
    %75 = vector.extract_strided_slice %31 {offsets = [0, 64], sizes = [32, 32], strides = [1, 1]} : vector<32x128xbf16> to vector<32x32xbf16>
    %76 = vector.shape_cast %75 : vector<32x32xbf16> to vector<2x16x32xbf16>
    %77 = vector.extract_strided_slice %32 {offsets = [0, 64], sizes = [32, 32], strides = [1, 1]} : vector<32x128xbf16> to vector<32x32xbf16>
    %78 = vector.shape_cast %77 : vector<32x32xbf16> to vector<2x16x32xbf16>
    "tpu.trace_start"() <{level = 10 : i32, message = "bnd,bmd->bnm"}> : () -> ()
    %cst_26 = arith.constant dense<0.000000e+00> : vector<2x16x16xf32>
    %79 = tpu.matmul %74, %76, %cst_26 {dimension_numbers = #tpu.dot_dimension_numbers<[2], [2], [1], [1], [0, 0, 0, 1, 1, 1], [0], [0]>} : vector<2x16x32xbf16>, vector<2x16x32xbf16>, vector<2x16x16xf32> -> vector<2x16x16xf32>
    "tpu.trace_stop"() : () -> ()
    %cst_27 = arith.constant dense<0xFF800000> : vector<2x16xf32>
    %80 = vector.multi_reduction <maximumf>, %79, %cst_27 [2] : vector<2x16x16xf32> to vector<2x16xf32>
    %81 = vector.shape_cast %80 : vector<2x16xf32> to vector<2x16x1xf32>
    %82 = vector.broadcast %81 : vector<2x16x1xf32> to vector<2x16x16xf32>
    %83 = arith.subf %79, %82 : vector<2x16x16xf32>
    %84 = math.exp %83 : vector<2x16x16xf32>
    %cst_28 = arith.constant dense<0.000000e+00> : vector<2x16xf32>
    %85 = vector.multi_reduction <add>, %84, %cst_28 [2] : vector<2x16x16xf32> to vector<2x16xf32>
    %86 = vector.shape_cast %85 : vector<2x16xf32> to vector<2x16x1xf32>
    %87 = tpu.reciprocal %86 {approx = true} : vector<2x16x1xf32> -> vector<2x16x1xf32>
    %88 = vector.broadcast %87 : vector<2x16x1xf32> to vector<2x16x16xf32>
    %89 = arith.mulf %84, %88 : vector<2x16x16xf32>
    %90 = arith.truncf %89 : vector<2x16x16xf32> to vector<2x16x16xbf16>
    "tpu.trace_start"() <{level = 10 : i32, message = "bnm,bmd->bnd"}> : () -> ()
    %cst_29 = arith.constant dense<0.000000e+00> : vector<2x16x32xf32>
    %91 = tpu.matmul %90, %78, %cst_29 {dimension_numbers = #tpu.dot_dimension_numbers<[2], [1], [1], [2], [0, 0, 0, 1, 1, 2], [0], [0]>} : vector<2x16x16xbf16>, vector<2x16x32xbf16>, vector<2x16x32xf32> -> vector<2x16x32xf32>
    "tpu.trace_stop"() : () -> ()
    %92 = vector.shape_cast %91 : vector<2x16x32xf32> to vector<32x32xf32>
    %93 = vector.extract_strided_slice %30 {offsets = [0, 96], sizes = [32, 32], strides = [1, 1]} : vector<32x128xbf16> to vector<32x32xbf16>
    %94 = vector.shape_cast %93 : vector<32x32xbf16> to vector<2x16x32xbf16>
    %95 = vector.extract_strided_slice %31 {offsets = [0, 96], sizes = [32, 32], strides = [1, 1]} : vector<32x128xbf16> to vector<32x32xbf16>
    %96 = vector.shape_cast %95 : vector<32x32xbf16> to vector<2x16x32xbf16>
    %97 = vector.extract_strided_slice %32 {offsets = [0, 96], sizes = [32, 32], strides = [1, 1]} : vector<32x128xbf16> to vector<32x32xbf16>
    %98 = vector.shape_cast %97 : vector<32x32xbf16> to vector<2x16x32xbf16>
    "tpu.trace_start"() <{level = 10 : i32, message = "bnd,bmd->bnm"}> : () -> ()
    %cst_30 = arith.constant dense<0.000000e+00> : vector<2x16x16xf32>
    %99 = tpu.matmul %94, %96, %cst_30 {dimension_numbers = #tpu.dot_dimension_numbers<[2], [2], [1], [1], [0, 0, 0, 1, 1, 1], [0], [0]>} : vector<2x16x32xbf16>, vector<2x16x32xbf16>, vector<2x16x16xf32> -> vector<2x16x16xf32>
    "tpu.trace_stop"() : () -> ()
    %cst_31 = arith.constant dense<0xFF800000> : vector<2x16xf32>
    %100 = vector.multi_reduction <maximumf>, %99, %cst_31 [2] : vector<2x16x16xf32> to vector<2x16xf32>
    %101 = vector.shape_cast %100 : vector<2x16xf32> to vector<2x16x1xf32>
    %102 = vector.broadcast %101 : vector<2x16x1xf32> to vector<2x16x16xf32>
    %103 = arith.subf %99, %102 : vector<2x16x16xf32>
    %104 = math.exp %103 : vector<2x16x16xf32>
    %cst_32 = arith.constant dense<0.000000e+00> : vector<2x16xf32>
    %105 = vector.multi_reduction <add>, %104, %cst_32 [2] : vector<2x16x16xf32> to vector<2x16xf32>
    %106 = vector.shape_cast %105 : vector<2x16xf32> to vector<2x16x1xf32>
    %107 = tpu.reciprocal %106 {approx = true} : vector<2x16x1xf32> -> vector<2x16x1xf32>
    %108 = vector.broadcast %107 : vector<2x16x1xf32> to vector<2x16x16xf32>
    %109 = arith.mulf %104, %108 : vector<2x16x16xf32>
    %110 = arith.truncf %109 : vector<2x16x16xf32> to vector<2x16x16xbf16>
    "tpu.trace_start"() <{level = 10 : i32, message = "bnm,bmd->bnd"}> : () -> ()
    %cst_33 = arith.constant dense<0.000000e+00> : vector<2x16x32xf32>
    %111 = tpu.matmul %110, %98, %cst_33 {dimension_numbers = #tpu.dot_dimension_numbers<[2], [1], [1], [2], [0, 0, 0, 1, 1, 2], [0], [0]>} : vector<2x16x16xbf16>, vector<2x16x32xbf16>, vector<2x16x32xf32> -> vector<2x16x32xf32>
    "tpu.trace_stop"() : () -> ()
    %112 = vector.shape_cast %111 : vector<2x16x32xf32> to vector<32x32xf32>
    %113 = tpu.concatenate %52, %72, %92, %112 in 1 : vector<32x32xf32>, vector<32x32xf32>, vector<32x32xf32>, vector<32x32xf32> -> vector<32x128xf32>
    %114 = arith.truncf %113 : vector<32x128xf32> to vector<32x128xbf16>
    %c0_34 = arith.constant 0 : index
    %c0_35 = arith.constant 0 : index
    %115 = vector.load %arg7[%c0_34, %c0_35] : memref<128x128xbf16, #tpu.memory_space<vmem>>, vector<128x128xbf16>
    %cst_36 = arith.constant dense<0.000000e+00> : vector<32x128xf32>
    %116 = tpu.matmul %114, %115, %cst_36 {dimension_numbers = #tpu.dot_dimension_numbers<[1], [0], [0], [1], [0, 0, 1, 1], [], []>} : vector<32x128xbf16>, vector<128x128xbf16>, vector<32x128xf32> -> vector<32x128xf32>
    %c0_37 = arith.constant 0 : index
    %c0_38 = arith.constant 0 : index
    %117 = vector.load %arg8[%c0_37, %c0_38] : memref<1x128xf32, #tpu.memory_space<vmem>>, vector<1x128xf32>
    %118 = vector.broadcast %117 : vector<1x128xf32> to vector<32x128xf32>
    %119 = arith.addf %116, %118 : vector<32x128xf32>
    %120 = arith.addf %0, %119 : vector<32x128xf32>
    %c0_39 = arith.constant 0 : index
    %c0_40 = arith.constant 0 : index
    %121 = vector.load %arg9[%c0_39, %c0_40] : memref<1x128xf32, #tpu.memory_space<vmem>>, vector<1x128xf32>
    %c0_41 = arith.constant 0 : index
    %c0_42 = arith.constant 0 : index
    %122 = vector.load %arg10[%c0_41, %c0_42] : memref<1x128xf32, #tpu.memory_space<vmem>>, vector<1x128xf32>
    %cst_43 = arith.constant dense<0.000000e+00> : vector<32xf32>
    %123 = vector.multi_reduction <add>, %120, %cst_43 [1] : vector<32x128xf32> to vector<32xf32>
    %124 = vector.shape_cast %123 : vector<32xf32> to vector<32x1xf32>
    %cst_44 = arith.constant 1.280000e+02 : f32
    %125 = vector.broadcast %cst_44 : f32 to vector<32x1xf32>
    %126 = arith.divf %124, %125 : vector<32x1xf32>
    %127 = vector.broadcast %126 : vector<32x1xf32> to vector<32x128xf32>
    %128 = arith.subf %120, %127 : vector<32x128xf32>
    %129 = arith.mulf %128, %128 : vector<32x128xf32>
    %cst_45 = arith.constant dense<0.000000e+00> : vector<32xf32>
    %130 = vector.multi_reduction <add>, %129, %cst_45 [1] : vector<32x128xf32> to vector<32xf32>
    %131 = vector.shape_cast %130 : vector<32xf32> to vector<32x1xf32>
    %cst_46 = arith.constant 1.280000e+02 : f32
    %132 = vector.broadcast %cst_46 : f32 to vector<32x1xf32>
    %133 = arith.divf %131, %132 : vector<32x1xf32>
    %cst_47 = arith.constant 9.99999974E-6 : f32
    %134 = vector.broadcast %cst_47 : f32 to vector<32x1xf32>
    %135 = arith.addf %133, %134 : vector<32x1xf32>
    %136 = math.rsqrt %135 : vector<32x1xf32>
    %137 = vector.broadcast %136 : vector<32x1xf32> to vector<32x128xf32>
    %138 = arith.mulf %128, %137 : vector<32x128xf32>
    %139 = vector.broadcast %121 : vector<1x128xf32> to vector<32x128xf32>
    %140 = arith.mulf %138, %139 : vector<32x128xf32>
    %141 = vector.broadcast %122 : vector<1x128xf32> to vector<32x128xf32>
    %142 = arith.addf %140, %141 : vector<32x128xf32>
    %143 = arith.truncf %142 : vector<32x128xf32> to vector<32x128xbf16>
    %c0_48 = arith.constant 0 : index
    %c0_49 = arith.constant 0 : index
    %144 = vector.load %arg11[%c0_48, %c0_49] : memref<128x256xbf16, #tpu.memory_space<vmem>>, vector<128x256xbf16>
    %cst_50 = arith.constant dense<0.000000e+00> : vector<32x256xf32>
    %145 = tpu.matmul %143, %144, %cst_50 {dimension_numbers = #tpu.dot_dimension_numbers<[1], [0], [0], [1], [0, 0, 1, 1], [], []>} : vector<32x128xbf16>, vector<128x256xbf16>, vector<32x256xf32> -> vector<32x256xf32>
    %c0_51 = arith.constant 0 : index
    %c0_52 = arith.constant 0 : index
    %146 = vector.load %arg12[%c0_51, %c0_52] : memref<1x256xf32, #tpu.memory_space<vmem>>, vector<1x256xf32>
    %147 = vector.broadcast %146 : vector<1x256xf32> to vector<32x256xf32>
    %148 = arith.addf %145, %147 : vector<32x256xf32>
    %cst_53 = arith.constant 0.000000e+00 : f32
    %149 = vector.broadcast %cst_53 : f32 to vector<32x256xf32>
    %150 = arith.maximumf %148, %149 : vector<32x256xf32>
    %151 = arith.truncf %150 : vector<32x256xf32> to vector<32x256xbf16>
    %c0_54 = arith.constant 0 : index
    %c0_55 = arith.constant 0 : index
    %152 = vector.load %arg13[%c0_54, %c0_55] : memref<256x128xbf16, #tpu.memory_space<vmem>>, vector<256x128xbf16>
    %cst_56 = arith.constant dense<0.000000e+00> : vector<32x128xf32>
    %153 = tpu.matmul %151, %152, %cst_56 {dimension_numbers = #tpu.dot_dimension_numbers<[1], [0], [0], [1], [0, 0, 1, 1], [], []>} : vector<32x256xbf16>, vector<256x128xbf16>, vector<32x128xf32> -> vector<32x128xf32>
    %c0_57 = arith.constant 0 : index
    %c0_58 = arith.constant 0 : index
    %154 = vector.load %arg14[%c0_57, %c0_58] : memref<1x128xf32, #tpu.memory_space<vmem>>, vector<1x128xf32>
    %155 = vector.broadcast %154 : vector<1x128xf32> to vector<32x128xf32>
    %156 = arith.addf %153, %155 : vector<32x128xf32>
    %157 = arith.addf %120, %156 : vector<32x128xf32>
    %c0_59 = arith.constant 0 : index
    %c0_60 = arith.constant 0 : index
    %158 = vector.load %arg15[%c0_59, %c0_60] : memref<1x128xf32, #tpu.memory_space<vmem>>, vector<1x128xf32>
    %c0_61 = arith.constant 0 : index
    %c0_62 = arith.constant 0 : index
    %159 = vector.load %arg16[%c0_61, %c0_62] : memref<1x128xf32, #tpu.memory_space<vmem>>, vector<1x128xf32>
    %cst_63 = arith.constant dense<0.000000e+00> : vector<32xf32>
    %160 = vector.multi_reduction <add>, %157, %cst_63 [1] : vector<32x128xf32> to vector<32xf32>
    %161 = vector.shape_cast %160 : vector<32xf32> to vector<32x1xf32>
    %cst_64 = arith.constant 1.280000e+02 : f32
    %162 = vector.broadcast %cst_64 : f32 to vector<32x1xf32>
    %163 = arith.divf %161, %162 : vector<32x1xf32>
    %164 = vector.broadcast %163 : vector<32x1xf32> to vector<32x128xf32>
    %165 = arith.subf %157, %164 : vector<32x128xf32>
    %166 = arith.mulf %165, %165 : vector<32x128xf32>
    %cst_65 = arith.constant dense<0.000000e+00> : vector<32xf32>
    %167 = vector.multi_reduction <add>, %166, %cst_65 [1] : vector<32x128xf32> to vector<32xf32>
    %168 = vector.shape_cast %167 : vector<32xf32> to vector<32x1xf32>
    %cst_66 = arith.constant 1.280000e+02 : f32
    %169 = vector.broadcast %cst_66 : f32 to vector<32x1xf32>
    %170 = arith.divf %168, %169 : vector<32x1xf32>
    %cst_67 = arith.constant 9.99999974E-6 : f32
    %171 = vector.broadcast %cst_67 : f32 to vector<32x1xf32>
    %172 = arith.addf %170, %171 : vector<32x1xf32>
    %173 = math.rsqrt %172 : vector<32x1xf32>
    %174 = vector.broadcast %173 : vector<32x1xf32> to vector<32x128xf32>
    %175 = arith.mulf %165, %174 : vector<32x128xf32>
    %176 = vector.broadcast %158 : vector<1x128xf32> to vector<32x128xf32>
    %177 = arith.mulf %175, %176 : vector<32x128xf32>
    %178 = vector.broadcast %159 : vector<1x128xf32> to vector<32x128xf32>
    %179 = arith.addf %177, %178 : vector<32x128xf32>
    %180 = arith.truncf %179 : vector<32x128xf32> to vector<32x128xbf16>
    %c0_68 = arith.constant 0 : index
    %c0_69 = arith.constant 0 : index
    %181 = vector.load %arg17[%c0_68, %c0_69] : memref<128x128xbf16, #tpu.memory_space<vmem>>, vector<128x128xbf16>
    %cst_70 = arith.constant dense<0.000000e+00> : vector<32x128xf32>
    %182 = tpu.matmul %180, %181, %cst_70 {dimension_numbers = #tpu.dot_dimension_numbers<[1], [0], [0], [1], [0, 0, 1, 1], [], []>} : vector<32x128xbf16>, vector<128x128xbf16>, vector<32x128xf32> -> vector<32x128xf32>
    %c0_71 = arith.constant 0 : index
    %c0_72 = arith.constant 0 : index
    %183 = vector.load %arg18[%c0_71, %c0_72] : memref<1x128xf32, #tpu.memory_space<vmem>>, vector<1x128xf32>
    %184 = vector.broadcast %183 : vector<1x128xf32> to vector<32x128xf32>
    %185 = arith.addf %182, %184 : vector<32x128xf32>
    %c0_73 = arith.constant 0 : index
    %c0_74 = arith.constant 0 : index
    %186 = vector.load %arg19[%c0_73, %c0_74] : memref<32x128xf32, #tpu.memory_space<vmem>>, vector<32x128xf32>
    tpu.vector_store %arg19[%c0_73, %c0_74], %185 {strides = array<i32>} : memref<32x128xf32, #tpu.memory_space<vmem>>, vector<32x128xf32>,
    return
  }
  func.func @transform_0(%arg0: i32) -> (i32, i32) {
    %c0_i32 = arith.constant 0 : i32
    %c0_i32_0 = arith.constant 0 : i32
    return %arg0, %c0_i32 : i32, i32
  }
  func.func @transform_1(%arg0: i32) -> (i32, i32) {
    %c0_i32 = arith.constant 0 : i32
    %c0_i32_0 = arith.constant 0 : i32
    %c0_i32_1 = arith.constant 0 : i32
    return %c0_i32, %c0_i32_0 : i32, i32
  }
  func.func @transform_2(%arg0: i32) -> (i32, i32) {
    %c0_i32 = arith.constant 0 : i32
    %c0_i32_0 = arith.constant 0 : i32
    %c0_i32_1 = arith.constant 0 : i32
    return %c0_i32, %c0_i32_0 : i32, i32
  }
  func.func @transform_3(%arg0: i32) -> (i32, i32) {
    %c0_i32 = arith.constant 0 : i32
    %c0_i32_0 = arith.constant 0 : i32
    %c0_i32_1 = arith.constant 0 : i32
    return %c0_i32, %c0_i32_0 : i32, i32
  }
  func.func @transform_4(%arg0: i32) -> (i32, i32) {
    %c0_i32 = arith.constant 0 : i32
    %c0_i32_0 = arith.constant 0 : i32
    %c0_i32_1 = arith.constant 0 : i32
    return %c0_i32, %c0_i32_0 : i32, i32
  }
  func.func @transform_5(%arg0: i32) -> (i32, i32) {
    %c0_i32 = arith.constant 0 : i32
    %c0_i32_0 = arith.constant 0 : i32
    %c0_i32_1 = arith.constant 0 : i32
    return %c0_i32, %c0_i32_0 : i32, i32
  }
  func.func @transform_6(%arg0: i32) -> (i32, i32) {
    %c0_i32 = arith.constant 0 : i32
    %c0_i32_0 = arith.constant 0 : i32
    %c0_i32_1 = arith.constant 0 : i32
    return %c0_i32, %c0_i32_0 : i32, i32
  }
  func.func @transform_7(%arg0: i32) -> (i32, i32) {
    %c0_i32 = arith.constant 0 : i32
    %c0_i32_0 = arith.constant 0 : i32
    %c0_i32_1 = arith.constant 0 : i32
    return %c0_i32, %c0_i32_0 : i32, i32
  }
  func.func @transform_8(%arg0: i32) -> (i32, i32) {
    %c0_i32 = arith.constant 0 : i32
    %c0_i32_0 = arith.constant 0 : i32
    %c0_i32_1 = arith.constant 0 : i32
    return %c0_i32, %c0_i32_0 : i32, i32
  }
  func.func @transform_9(%arg0: i32) -> (i32, i32) {
    %c0_i32 = arith.constant 0 : i32
    %c0_i32_0 = arith.constant 0 : i32
    %c0_i32_1 = arith.constant 0 : i32
    return %c0_i32, %c0_i32_0 : i32, i32
  }
  func.func @transform_10(%arg0: i32) -> (i32, i32) {
    %c0_i32 = arith.constant 0 : i32
    %c0_i32_0 = arith.constant 0 : i32
    %c0_i32_1 = arith.constant 0 : i32
    return %c0_i32, %c0_i32_0 : i32, i32
  }
  func.func @transform_11(%arg0: i32) -> (i32, i32) {
    %c0_i32 = arith.constant 0 : i32
    %c0_i32_0 = arith.constant 0 : i32
    %c0_i32_1 = arith.constant 0 : i32
    return %c0_i32, %c0_i32_0 : i32, i32
  }
  func.func @transform_12(%arg0: i32) -> (i32, i32) {
    %c0_i32 = arith.constant 0 : i32
    %c0_i32_0 = arith.constant 0 : i32
    %c0_i32_1 = arith.constant 0 : i32
    return %c0_i32, %c0_i32_0 : i32, i32
  }
  func.func @transform_13(%arg0: i32) -> (i32, i32) {
    %c0_i32 = arith.constant 0 : i32
    %c0_i32_0 = arith.constant 0 : i32
    %c0_i32_1 = arith.constant 0 : i32
    return %c0_i32, %c0_i32_0 : i32, i32
  }
  func.func @transform_14(%arg0: i32) -> (i32, i32) {
    %c0_i32 = arith.constant 0 : i32
    %c0_i32_0 = arith.constant 0 : i32
    %c0_i32_1 = arith.constant 0 : i32
    return %c0_i32, %c0_i32_0 : i32, i32
  }
  func.func @transform_15(%arg0: i32) -> (i32, i32) {
    %c0_i32 = arith.constant 0 : i32
    %c0_i32_0 = arith.constant 0 : i32
    %c0_i32_1 = arith.constant 0 : i32
    return %c0_i32, %c0_i32_0 : i32, i32
  }
  func.func @transform_16(%arg0: i32) -> (i32, i32) {
    %c0_i32 = arith.constant 0 : i32
    %c0_i32_0 = arith.constant 0 : i32
    %c0_i32_1 = arith.constant 0 : i32
    return %c0_i32, %c0_i32_0 : i32, i32
  }
  func.func @transform_17(%arg0: i32) -> (i32, i32) {
    %c0_i32 = arith.constant 0 : i32
    %c0_i32_0 = arith.constant 0 : i32
    %c0_i32_1 = arith.constant 0 : i32
    return %c0_i32, %c0_i32_0 : i32, i32
  }
  func.func @transform_18(%arg0: i32) -> (i32, i32) {
    %c0_i32 = arith.constant 0 : i32
    %c0_i32_0 = arith.constant 0 : i32
    return %arg0, %c0_i32 : i32, i32
  }
}

</mosaic_0001>

<llo_original>
// kernel: tpu_custom_call.1
$region0: #{tpu_custom_call.1}
  #allocation0 [shape = 'u32[]', space=smem, size = 0x4, offset = 0x4, fixed_abs, tag = 'smem constant byte address 0x4 - core index']
  #allocation1 [shape = 'u32[144,128]{1,0:T(1,128)}', space=vmem, size = 0x12000, scoped, tag = 'internal scratch']
  %s0 = inlined_call_operand.hbm [shape: f32[32,128], index: 0, kind: input, shape index: {}]
  %s1 = inlined_call_operand.vmem [shape: f32[1,128], index: 1, kind: input, shape index: {}]
  %s2 = inlined_call_operand.vmem [shape: f32[1,128], index: 2, kind: input, shape index: {}]
  %s3 = inlined_call_operand.hbm [shape: bf16[128,128], index: 3, kind: input, shape index: {}]
  %s4 = inlined_call_operand.hbm [shape: bf16[128,128], index: 4, kind: input, shape index: {}]
  %s5 = inlined_call_operand.hbm [shape: bf16[128,128], index: 5, kind: input, shape index: {}]
  %s6 = inlined_call_operand.hbm [shape: bf16[128,128], index: 6, kind: input, shape index: {}]
  %s7 = inlined_call_operand.vmem [shape: f32[1,128], index: 7, kind: input, shape index: {}]
  %s8 = inlined_call_operand.vmem [shape: f32[1,128], index: 8, kind: input, shape index: {}]
  %s9 = inlined_call_operand.vmem [shape: f32[1,128], index: 9, kind: input, shape index: {}]
  %s10 = inlined_call_operand.hbm [shape: bf16[128,256], index: 10, kind: input, shape index: {}]
  %s11 = inlined_call_operand.vmem [shape: f32[1,256], index: 11, kind: input, shape index: {}]
  %s12 = inlined_call_operand.hbm [shape: bf16[256,128], index: 12, kind: input, shape index: {}]
  %s13 = inlined_call_operand.vmem [shape: f32[1,128], index: 13, kind: input, shape index: {}]
  %s14 = inlined_call_operand.vmem [shape: f32[1,128], index: 14, kind: input, shape index: {}]
  %s15 = inlined_call_operand.vmem [shape: f32[1,128], index: 15, kind: input, shape index: {}]
  %s16 = inlined_call_operand.hbm [shape: bf16[128,128], index: 16, kind: input, shape index: {}]
  %s17 = inlined_call_operand.vmem [shape: f32[1,128], index: 17, kind: input, shape index: {}]
  %s18 = inlined_call_operand.hbm [shape: f32[32,128], index: 18, kind: output, shape index: {}]
  %s19 = sld [smem:[#allocation0]]
  $region114: #{tpu_custom_call.1} parent=0
    _
  %s21 = ssub.s32 1, %s19
  %s22 = scalar_select 0, %s21, %s19
  $region1: #{tpu_custom_call.1} parent=0
    #allocation2 [shape = 'u8[16384]{0}', space=vmem, size = 0x4000, scoped, tag = 'input window, operand 0, single buffered']
    #allocation3 [shape = 's32[1]{0}', space=sflag, size = 0x4, scoped, tag = 'scoped memory for tpu_custom_call.1']
    #allocation4 [shape = 's32[1]{0}', space=sflag, size = 0x4, scoped, tag = 'scoped memory for tpu_custom_call.1']
    #allocation5 [shape = 'u8[32768]{0}', space=vmem, size = 0x8000, scoped, tag = 'input window, operand 3, single buffered']
    #allocation6 [shape = 's32[1]{0}', space=sflag, size = 0x4, scoped, tag = 'scoped memory for tpu_custom_call.1']
    #allocation7 [shape = 'u8[32768]{0}', space=vmem, size = 0x8000, scoped, tag = 'input window, operand 4, single buffered']
    #allocation8 [shape = 'u8[32768]{0}', space=vmem, size = 0x8000, scoped, tag = 'input window, operand 5, single buffered']
    #allocation9 [shape = 's32[1]{0}', space=sflag, size = 0x4, scoped, tag = 'scoped memory for tpu_custom_call.1']
    #allocation10 [shape = 'u8[32768]{0}', space=vmem, size = 0x8000, scoped, tag = 'input window, operand 6, single buffered']
    #allocation11 [shape = 'u8[65536]{0}', space=vmem, size = 0x10000, scoped, tag = 'input window, operand 10, single buffered']
    #allocation12 [shape = 's32[1]{0}', space=sflag, size = 0x4, scoped, tag = 'scoped memory for tpu_custom_call.1']
    #allocation13 [shape = 'u8[65536]{0}', space=vmem, size = 0x10000, scoped, tag = 'input window, operand 12, single buffered']
    #allocation14 [shape = 'u8[32768]{0}', space=vmem, size = 0x8000, scoped, tag = 'input window, operand 16, single buffered']
    #allocation15 [shape = 's32[1]{0}', space=sflag, size = 0x4, scoped, tag = 'scoped memory for tpu_custom_call.1']
    #allocation16 [shape = 'u8[16384]{0}', space=vmem, size = 0x4000, scoped, tag = 'output window, operand 0, single buffered']
    %23 = vsyncpa [#allocation3], 0
    %24 = vsyncpa [#allocation6], 0
    %25 = vsyncpa [#allocation9], 0
    %26 = vsyncpa [#allocation12], 0
    %27 = vsyncpa [#allocation15], 0
    %28 = vsyncpa [#allocation4], 0
    // Predicated region
    $region2: #{tpu_custom_call.1} parent=1 // pred_check
      _
    $region3: #{tpu_custom_call.1} parent=1 // pred_check_branch
      %30 = sbr.rel (0) target = $region5
    $region4: #{tpu_custom_call.1} parent=1 // pred_region
      %s32 = ssub.s32 512, 512
      %33 = vsyncadd [#allocation3], %s32
      %s34 = sshll.u32 [#allocation2], 4
      %s35 = int_to_ptr.vmem [resolvable:$true] %s34
      %40 = dma.hbm_to_vmem [thread:$0]  %s0, 512, %s35, [#allocation3], 128, 128, 8
    $region5: #{tpu_custom_call.1} parent=1 // pred_fallthru
      _
    // Predicated region
    $region6: #{tpu_custom_call.1} parent=1 // pred_check
      _
    $region7: #{tpu_custom_call.1} parent=1 // pred_check_branch
      %42 = sbr.rel (0) target = $region9
    $region8: #{tpu_custom_call.1} parent=1 // pred_region
      _
    $region9: #{tpu_custom_call.1} parent=1 // pred_fallthru
      _
    // Predicated region
    $region10: #{tpu_custom_call.1} parent=1 // pred_check
      _
    $region11: #{tpu_custom_call.1} parent=1 // pred_check_branch
      %44 = sbr.rel (0) target = $region13
    $region12: #{tpu_custom_call.1} parent=1 // pred_region
      _
    $region13: #{tpu_custom_call.1} parent=1 // pred_fallthru
      _
    // Predicated region
    $region14: #{tpu_custom_call.1} parent=1 // pred_check
      _
    $region15: #{tpu_custom_call.1} parent=1 // pred_check_branch
      %46 = sbr.rel (0) target = $region17
    $region16: #{tpu_custom_call.1} parent=1 // pred_region
      %s48 = ssub.s32 1024, 1024
      %49 = vsyncadd [#allocation6], %s48
      %s50 = sshll.u32 [#allocation5], 4
      %s51 = int_to_ptr.vmem [resolvable:$true] %s50
      %56 = dma.hbm_to_vmem [thread:$0]  %s3, 1024, %s51, [#allocation6], 64, 64, 4
    $region17: #{tpu_custom_call.1} parent=1 // pred_fallthru
      _
    // Predicated region
    $region18: #{tpu_custom_call.1} parent=1 // pred_check
      _
    $region19: #{tpu_custom_call.1} parent=1 // pred_check_branch
      %58 = sbr.rel (0) target = $region21
    $region20: #{tpu_custom_call.1} parent=1 // pred_region
      %s60 = ssub.s32 1024, 1024
      %61 = vsyncadd [#allocation6], %s60
      %s62 = sshll.u32 [#allocation7], 4
      %s63 = int_to_ptr.vmem [resolvable:$true] %s62
      %68 = dma.hbm_to_vmem [thread:$0]  %s4, 1024, %s63, [#allocation6], 64, 64, 4
    $region21: #{tpu_custom_call.1} parent=1 // pred_fallthru
      _
    // Predicated region
    $region22: #{tpu_custom_call.1} parent=1 // pred_check
      _
    $region23: #{tpu_custom_call.1} parent=1 // pred_check_branch
      %70 = sbr.rel (0) target = $region25
    $region24: #{tpu_custom_call.1} parent=1 // pred_region
      %s72 = ssub.s32 1024, 1024
      %73 = vsyncadd [#allocation9], %s72
      %s74 = sshll.u32 [#allocation8], 4
      %s75 = int_to_ptr.vmem [resolvable:$true] %s74
      %80 = dma.hbm_to_vmem [thread:$0]  %s5, 1024, %s75, [#allocation9], 64, 64, 4
    $region25: #{tpu_custom_call.1} parent=1 // pred_fallthru
      _
    // Predicated region
    $region26: #{tpu_custom_call.1} parent=1 // pred_check
      _
    $region27: #{tpu_custom_call.1} parent=1 // pred_check_branch
      %82 = sbr.rel (0) target = $region29
    $region28: #{tpu_custom_call.1} parent=1 // pred_region
      %s84 = ssub.s32 1024, 1024
      %85 = vsyncadd [#allocation9], %s84
      %s86 = sshll.u32 [#allocation10], 4
      %s87 = int_to_ptr.vmem [resolvable:$true] %s86
      %92 = dma.hbm_to_vmem [thread:$0]  %s6, 1024, %s87, [#allocation9], 64, 64, 4
    $region29: #{tpu_custom_call.1} parent=1 // pred_fallthru
      _
    // Predicated region
    $region30: #{tpu_custom_call.1} parent=1 // pred_check
      _
    $region31: #{tpu_custom_call.1} parent=1 // pred_check_branch
      %94 = sbr.rel (0) target = $region33
    $region32: #{tpu_custom_call.1} parent=1 // pred_region
      _
    $region33: #{tpu_custom_call.1} parent=1 // pred_fallthru
      _
    // Predicated region
    $region34: #{tpu_custom_call.1} parent=1 // pred_check
      _
    $region35: #{tpu_custom_call.1} parent=1 // pred_check_branch
      %96 = sbr.rel (0) target = $region37
    $region36: #{tpu_custom_call.1} parent=1 // pred_region
      _
    $region37: #{tpu_custom_call.1} parent=1 // pred_fallthru
      _
    // Predicated region
    $region38: #{tpu_custom_call.1} parent=1 // pred_check
      _
    $region39: #{tpu_custom_call.1} parent=1 // pred_check_branch
      %98 = sbr.rel (0) target = $region41
    $region40: #{tpu_custom_call.1} parent=1 // pred_region
      _
    $region41: #{tpu_custom_call.1} parent=1 // pred_fallthru
      _
    // Predicated region
    $region42: #{tpu_custom_call.1} parent=1 // pred_check
      _
    $region43: #{tpu_custom_call.1} parent=1 // pred_check_branch
      %100 = sbr.rel (0) target = $region45
    $region44: #{tpu_custom_call.1} parent=1 // pred_region
      %s102 = ssub.s32 2048, 2048
      %103 = vsyncadd [#allocation12], %s102
      %s104 = sshll.u32 [#allocation11], 4
      %s105 = int_to_ptr.vmem [resolvable:$true] %s104
      %110 = dma.hbm_to_vmem [thread:$0]  %s10, 2048, %s105, [#allocation12], 128, 128, 8
    $region45: #{tpu_custom_call.1} parent=1 // pred_fallthru
      _
    // Predicated region
    $region46: #{tpu_custom_call.1} parent=1 // pred_check
      _
    $region47: #{tpu_custom_call.1} parent=1 // pred_check_branch
      %112 = sbr.rel (0) target = $region49
    $region48: #{tpu_custom_call.1} parent=1 // pred_region
      _
    $region49: #{tpu_custom_call.1} parent=1 // pred_fallthru
      _
    // Predicated region
    $region50: #{tpu_custom_call.1} parent=1 // pred_check
      _
    $region51: #{tpu_custom_call.1} parent=1 // pred_check_branch
      %114 = sbr.rel (0) target = $region53
    $region52: #{tpu_custom_call.1} parent=1 // pred_region
      %s116 = ssub.s32 2048, 2048
      %117 = vsyncadd [#allocation12], %s116
      %s118 = sshll.u32 [#allocation13], 4
      %s119 = int_to_ptr.vmem [resolvable:$true] %s118
      %124 = dma.hbm_to_vmem [thread:$0]  %s12, 2048, %s119, [#allocation12], 64, 64, 4
    $region53: #{tpu_custom_call.1} parent=1 // pred_fallthru
      _
    // Predicated region
    $region54: #{tpu_custom_call.1} parent=1 // pred_check
      _
    $region55: #{tpu_custom_call.1} parent=1 // pred_check_branch
      %126 = sbr.rel (0) target = $region57
    $region56: #{tpu_custom_call.1} parent=1 // pred_region
      _
    $region57: #{tpu_custom_call.1} parent=1 // pred_fallthru
      _
    // Predicated region
    $region58: #{tpu_custom_call.1} parent=1 // pred_check
      _
    $region59: #{tpu_custom_call.1} parent=1 // pred_check_branch
      %128 = sbr.rel (0) target = $region61
    $region60: #{tpu_custom_call.1} parent=1 // pred_region
      _
    $region61: #{tpu_custom_call.1} parent=1 // pred_fallthru
      _
    // Predicated region
    $region62: #{tpu_custom_call.1} parent=1 // pred_check
      _
    $region63: #{tpu_custom_call.1} parent=1 // pred_check_branch
      %130 = sbr.rel (0) target = $region65
    $region64: #{tpu_custom_call.1} parent=1 // pred_region
      _
    $region65: #{tpu_custom_call.1} parent=1 // pred_fallthru
      _
    // Predicated region
    $region66: #{tpu_custom_call.1} parent=1 // pred_check
      _
    $region67: #{tpu_custom_call.1} parent=1 // pred_check_branch
      %132 = sbr.rel (0) target = $region69
    $region68: #{tpu_custom_call.1} parent=1 // pred_region
      %s134 = ssub.s32 1024, 1024
      %135 = vsyncadd [#allocation15], %s134
      %s136 = sshll.u32 [#allocation14], 4
      %s137 = int_to_ptr.vmem [resolvable:$true] %s136
      %142 = dma.hbm_to_vmem [thread:$0]  %s16, 1024, %s137, [#allocation15], 64, 64, 4
    $region69: #{tpu_custom_call.1} parent=1 // pred_fallthru
      _
    // Predicated region
    $region70: #{tpu_custom_call.1} parent=1 // pred_check
      _
    $region71: #{tpu_custom_call.1} parent=1 // pred_check_branch
      %144 = sbr.rel (0) target = $region73
    $region72: #{tpu_custom_call.1} parent=1 // pred_region
      _
    $region73: #{tpu_custom_call.1} parent=1 // pred_fallthru
      _
    // Predicated region
    $region74: #{tpu_custom_call.1} parent=1 // pred_check
      _
    $region75: #{tpu_custom_call.1} parent=1 // pred_check_branch
      %146 = sbr.rel (0) target = $region77
    $region76: #{tpu_custom_call.1} parent=1 // pred_region
      %147 = dma.done [#allocation3], 512
    $region77: #{tpu_custom_call.1} parent=1 // pred_fallthru
      _
    // Predicated region
    $region78: #{tpu_custom_call.1} parent=1 // pred_check
      _
    $region79: #{tpu_custom_call.1} parent=1 // pred_check_branch
      %149 = sbr.rel (0) target = $region81
    $region80: #{tpu_custom_call.1} parent=1 // pred_region
      %150 = dma.done [#allocation6], 1024
    $region81: #{tpu_custom_call.1} parent=1 // pred_fallthru
      _
    // Predicated region
    $region82: #{tpu_custom_call.1} parent=1 // pred_check
      _
    $region83: #{tpu_custom_call.1} parent=1 // pred_check_branch
      %152 = sbr.rel (0) target = $region85
    $region84: #{tpu_custom_call.1} parent=1 // pred_region
      %153 = dma.done [#allocation6], 1024
    $region85: #{tpu_custom_call.1} parent=1 // pred_fallthru
      _
    // Predicated region
    $region86: #{tpu_custom_call.1} parent=1 // pred_check
      _
    $region87: #{tpu_custom_call.1} parent=1 // pred_check_branch
      %155 = sbr.rel (0) target = $region89
    $region88: #{tpu_custom_call.1} parent=1 // pred_region
      %156 = dma.done [#allocation9], 1024
    $region89: #{tpu_custom_call.1} parent=1 // pred_fallthru
      _
    // Predicated region
    $region90: #{tpu_custom_call.1} parent=1 // pred_check
      _
    $region91: #{tpu_custom_call.1} parent=1 // pred_check_branch
      %158 = sbr.rel (0) target = $region93
    $region92: #{tpu_custom_call.1} parent=1 // pred_region
      %159 = dma.done [#allocation9], 1024
    $region93: #{tpu_custom_call.1} parent=1 // pred_fallthru
      _
    // Predicated region
    $region94: #{tpu_custom_call.1} parent=1 // pred_check
      _
    $region95: #{tpu_custom_call.1} parent=1 // pred_check_branch
      %161 = sbr.rel (0) target = $region97
    $region96: #{tpu_custom_call.1} parent=1 // pred_region
      %162 = dma.done [#allocation12], 2048
    $region97: #{tpu_custom_call.1} parent=1 // pred_fallthru
      _
    // Predicated region
    $region98: #{tpu_custom_call.1} parent=1 // pred_check
      _
    $region99: #{tpu_custom_call.1} parent=1 // pred_check_branch
      %164 = sbr.rel (0) target = $region101
    $region100: #{tpu_custom_call.1} parent=1 // pred_region
      %165 = dma.done [#allocation12], 2048
    $region101: #{tpu_custom_call.1} parent=1 // pred_fallthru
      _
    // Predicated region
    $region102: #{tpu_custom_call.1} parent=1 // pred_check
      _
    $region103: #{tpu_custom_call.1} parent=1 // pred_check_branch
      %167 = sbr.rel (0) target = $region105
    $region104: #{tpu_custom_call.1} parent=1 // pred_region
      %168 = dma.done [#allocation15], 1024
    $region105: #{tpu_custom_call.1} parent=1 // pred_fallthru
      _
    %v170 = vld [vmem:[#allocation2] sm:$0xff]
    %v171 = vld [vmem:[#allocation2 + $0x8] sm:$0xff]
    %v172 = vld [vmem:[#allocation2 + $0x10] sm:$0xff]
    %v173 = vld [vmem:[#allocation2 + $0x18] sm:$0xff]
    %v174 = vld [vmem:[%s1] sm:$0x1]
    %v175 = vld [vmem:[%s2] sm:$0x1]
    %176 = vadd.xlane.f32.xlu0 %v170
    %v177 = vpop.xlane.xlu0 %176
    %178 = vadd.xlane.f32.xlu0 %v171
    %v179 = vpop.xlane.xlu0 %178
    %180 = vadd.xlane.f32.xlu0 %v172
    %v181 = vpop.xlane.xlu0 %180
    %182 = vadd.xlane.f32.xlu0 %v173
    %v183 = vpop.xlane.xlu0 %182
    %v184 = vrcp.pop 128.0
    %v185 = vmul.f32 %v177, %v184
    %v186 = vmul.f32 %v179, %v184
    %v187 = vmul.f32 %v181, %v184
    %v188 = vmul.f32 %v183, %v184
    %v189 = vsub.f32 %v170, %v185
    %v190 = vsub.f32 %v171, %v186
    %v191 = vsub.f32 %v172, %v187
    %v192 = vsub.f32 %v173, %v188
    %v193 = vmul.f32 %v189, %v189
    %v194 = vmul.f32 %v190, %v190
    %v195 = vmul.f32 %v191, %v191
    %v196 = vmul.f32 %v192, %v192
    %197 = vadd.xlane.f32.xlu0 %v193
    %v198 = vpop.xlane.xlu0 %197
    %199 = vadd.xlane.f32.xlu0 %v194
    %v200 = vpop.xlane.xlu0 %199
    %201 = vadd.xlane.f32.xlu0 %v195
    %v202 = vpop.xlane.xlu0 %201
    %203 = vadd.xlane.f32.xlu0 %v196
    %v204 = vpop.xlane.xlu0 %203
    %v205 = vmul.f32 %v198, %v184
    %v206 = vmul.f32 %v200, %v184
    %v207 = vmul.f32 %v202, %v184
    %v208 = vmul.f32 %v204, %v184
    %v209 = vadd.f32 %v205, 1e-05
    %v210 = vadd.f32 %v206, 1e-05
    %v211 = vadd.f32 %v207, 1e-05
    %v212 = vadd.f32 %v208, 1e-05
    %v213 = vrsqrt.pop %v209
    %v214 = vrsqrt.pop %v210
    %v215 = vrsqrt.pop %v211
    %v216 = vrsqrt.pop %v212
    %v217 = vmul.f32 %v189, %v213
    %v218 = vmul.f32 %v190, %v214
    %v219 = vmul.f32 %v191, %v215
    %v220 = vmul.f32 %v192, %v216
    %v222 = vlaneseq
    %v223 = vshrl.u32 %v222, 7
    %v224 = vsub.s32 0, %v223
    %v225 = vrot.slane %v174, %v224
    %v227 = vmul.f32 %v217, %v225
    %v228 = vmul.f32 %v218, %v225
    %v229 = vmul.f32 %v219, %v225
    %v230 = vmul.f32 %v220, %v225
    %v232 = vlaneseq
    %v233 = vshrl.u32 %v232, 7
    %v234 = vsub.s32 0, %v233
    %v235 = vrot.slane %v175, %v234
    %v237 = vadd.f32 %v227, %v235
    %v238 = vadd.f32 %v228, %v235
    %v239 = vadd.f32 %v229, %v235
    %v240 = vadd.f32 %v230, %v235
    %v241 = vpack.c.bf16 %v238, %v237
    %v242 = vpack.c.bf16 %v240, %v239
    %v243 = vld [vmem:[#allocation5] sm:$0xf]
    %v244 = vld [vmem:[#allocation5 + $0x4] sm:$0xf]
    %v245 = vld [vmem:[#allocation5 + $0x8] sm:$0xf]
    %v246 = vld [vmem:[#allocation5 + $0xc] sm:$0xf]
    %v247 = vld [vmem:[#allocation5 + $0x10] sm:$0xf]
    %v248 = vld [vmem:[#allocation5 + $0x14] sm:$0xf]
    %v249 = vld [vmem:[#allocation5 + $0x18] sm:$0xf]
    %v250 = vld [vmem:[#allocation5 + $0x1c] sm:$0xf]
    %v251 = vld [vmem:[#allocation5 + $0x20] sm:$0xf]
    %v252 = vld [vmem:[#allocation5 + $0x24] sm:$0xf]
    %v253 = vld [vmem:[#allocation5 + $0x28] sm:$0xf]
    %v254 = vld [vmem:[#allocation5 + $0x2c] sm:$0xf]
    %v255 = vld [vmem:[#allocation5 + $0x30] sm:$0xf]
    %v256 = vld [vmem:[#allocation5 + $0x34] sm:$0xf]
    %v257 = vld [vmem:[#allocation5 + $0x38] sm:$0xf]
    %v258 = vld [vmem:[#allocation5 + $0x3c] sm:$0xf]
    %v275 = vunpack.c.l.b16 %v243
    %v276 = vunpack.c.l.b16 %v244
    %v277 = vunpack.c.l.b16 %v245
    %v278 = vunpack.c.l.b16 %v246
    %v279 = vunpack.c.l.b16 %v247
    %v280 = vunpack.c.l.b16 %v248
    %v281 = vunpack.c.l.b16 %v249
    %v282 = vunpack.c.l.b16 %v250
    %v283 = vunpack.c.l.b16 %v251
    %v284 = vunpack.c.l.b16 %v252
    %v285 = vunpack.c.l.b16 %v253
    %v286 = vunpack.c.l.b16 %v254
    %v287 = vunpack.c.l.b16 %v255
    %v288 = vunpack.c.l.b16 %v256
    %v289 = vunpack.c.l.b16 %v257
    %v290 = vunpack.c.l.b16 %v258
    %v291 = vpack.c.b16 %v276, %v275
    %v292 = vpack.c.b16 %v278, %v277
    %v293 = vpack.c.b16 %v280, %v279
    %v294 = vpack.c.b16 %v282, %v281
    %v295 = vpack.c.b16 %v284, %v283
    %v296 = vpack.c.b16 %v286, %v285
    %v297 = vpack.c.b16 %v288, %v287
    %v298 = vpack.c.b16 %v290, %v289
    %307 = vmatprep.subr.bf16.mxu0 0
    %308 = vmatpush1.bf16.msra.mxu0 %v291
    %309 = vmatprep.subr.bf16.mxu0 0
    %310 = vmatpush1.bf16.msra.mxu0 %v292
    %311 = vmatprep.subr.bf16.mxu0 0
    %312 = vmatpush1.bf16.msra.mxu0 %v293
    %313 = vmatprep.subr.bf16.mxu0 0
    %314 = vmatpush1.bf16.msra.mxu0 %v294
    %315 = vmatprep.subr.bf16.mxu0 0
    %316 = vmatpush1.bf16.msra.mxu0 %v295
    %317 = vmatprep.subr.bf16.mxu0 0
    %318 = vmatpush1.bf16.msra.mxu0 %v296
    %319 = vmatprep.subr.bf16.mxu0 0
    %320 = vmatpush1.bf16.msra.mxu0 %v297
    %321 = vmatprep.subr.bf16.mxu0 0
    %322 = vmatpush1.bf16.msra.mxu0 %v298
    %323 = vmatprep.subr.bf16.mxu0 0
    %324 = vmatpush1.bf16.msra.mxu0 0
    %325 = vmatprep.subr.bf16.mxu0 0
    %326 = vmatpush1.bf16.msra.mxu0 0
    %327 = vmatprep.subr.bf16.mxu0 0
    %328 = vmatpush1.bf16.msra.mxu0 0
    %329 = vmatprep.subr.bf16.mxu0 0
    %330 = vmatpush1.bf16.msra.mxu0 0
    %331 = vmatprep.subr.bf16.mxu0 0
    %332 = vmatpush1.bf16.msra.mxu0 0
    %333 = vmatprep.subr.bf16.mxu0 0
    %334 = vmatpush1.bf16.msra.mxu0 0
    %335 = vmatprep.subr.bf16.mxu0 0
    %336 = vmatpush1.bf16.msra.mxu0 0
    %337 = vmatprep.subr.bf16.mxu0 0
    %338 = vmatpush1.bf16.msra.mxu0 0
    %339 = vmatprep.mubr.bf16.mxu0 0
    %340 = vmatmul.mubr.bf16.gmra.mrb[0].mxu0 %v241
    %v341 = vpop.f32.mrb[0].mxu0
    %v342 = vadd.f32 0.0, %v341
    %v343 = vpop.f32.mrb[0].mxu0
    %v344 = vpop.f32.mrb[0].mxu0
    %v345 = vadd.f32 0.0, %v344
    %v346 = vpop.f32.mrb[0].mxu0
    %347 = vmatprep.mubr.bf16.mxu0 0
    %348 = vmatmul.mubr.bf16.gmra.mrb[0].mxu0 %v242
    %v349 = vpop.f32.mrb[0].mxu0
    %v350 = vadd.f32 0.0, %v349
    %v351 = vpop.f32.mrb[0].mxu0
    %v352 = vpop.f32.mrb[0].mxu0
    %v353 = vadd.f32 0.0, %v352
    %v354 = vpop.f32.mrb[0].mxu0
    %355 = vdwg.mxu0
    %v356 = vld [vmem:[#allocation7] sm:$0xf]
    %v357 = vld [vmem:[#allocation7 + $0x4] sm:$0xf]
    %v358 = vld [vmem:[#allocation7 + $0x8] sm:$0xf]
    %v359 = vld [vmem:[#allocation7 + $0xc] sm:$0xf]
    %v360 = vld [vmem:[#allocation7 + $0x10] sm:$0xf]
    %v361 = vld [vmem:[#allocation7 + $0x14] sm:$0xf]
    %v362 = vld [vmem:[#allocation7 + $0x18] sm:$0xf]
    %v363 = vld [vmem:[#allocation7 + $0x1c] sm:$0xf]
    %v364 = vld [vmem:[#allocation7 + $0x20] sm:$0xf]
    %v365 = vld [vmem:[#allocation7 + $0x24] sm:$0xf]
    %v366 = vld [vmem:[#allocation7 + $0x28] sm:$0xf]
    %v367 = vld [vmem:[#allocation7 + $0x2c] sm:$0xf]
    %v368 = vld [vmem:[#allocation7 + $0x30] sm:$0xf]
    %v369 = vld [vmem:[#allocation7 + $0x34] sm:$0xf]
    %v370 = vld [vmem:[#allocation7 + $0x38] sm:$0xf]
    %v371 = vld [vmem:[#allocation7 + $0x3c] sm:$0xf]
    %v388 = vunpack.c.l.b16 %v356
    %v389 = vunpack.c.l.b16 %v357
    %v390 = vunpack.c.l.b16 %v358
    %v391 = vunpack.c.l.b16 %v359
    %v392 = vunpack.c.l.b16 %v360
    %v393 = vunpack.c.l.b16 %v361
    %v394 = vunpack.c.l.b16 %v362
    %v395 = vunpack.c.l.b16 %v363
    %v396 = vunpack.c.l.b16 %v364
    %v397 = vunpack.c.l.b16 %v365
    %v398 = vunpack.c.l.b16 %v366
    %v399 = vunpack.c.l.b16 %v367
    %v400 = vunpack.c.l.b16 %v368
    %v401 = vunpack.c.l.b16 %v369
    %v402 = vunpack.c.l.b16 %v370
    %v403 = vunpack.c.l.b16 %v371
    %v404 = vpack.c.b16 %v389, %v388
    %v405 = vpack.c.b16 %v391, %v390
    %v406 = vpack.c.b16 %v393, %v392
    %v407 = vpack.c.b16 %v395, %v394
    %v408 = vpack.c.b16 %v397, %v396
    %v409 = vpack.c.b16 %v399, %v398
    %v410 = vpack.c.b16 %v401, %v400
    %v411 = vpack.c.b16 %v403, %v402
    %420 = vmatprep.subr.bf16.mxu0 0
    %421 = vmatpush1.bf16.msra.mxu0 %v404
    %422 = vmatprep.subr.bf16.mxu0 0
    %423 = vmatpush1.bf16.msra.mxu0 %v405
    %424 = vmatprep.subr.bf16.mxu0 0
    %425 = vmatpush1.bf16.msra.mxu0 %v406
    %426 = vmatprep.subr.bf16.mxu0 0
    %427 = vmatpush1.bf16.msra.mxu0 %v407
    %428 = vmatprep.subr.bf16.mxu0 0
    %429 = vmatpush1.bf16.msra.mxu0 %v408
    %430 = vmatprep.subr.bf16.mxu0 0
    %431 = vmatpush1.bf16.msra.mxu0 %v409
    %432 = vmatprep.subr.bf16.mxu0 0
    %433 = vmatpush1.bf16.msra.mxu0 %v410
    %434 = vmatprep.subr.bf16.mxu0 0
    %435 = vmatpush1.bf16.msra.mxu0 %v411
    %436 = vmatprep.subr.bf16.mxu0 0
    %437 = vmatpush1.bf16.msra.mxu0 0
    %438 = vmatprep.subr.bf16.mxu0 0
    %439 = vmatpush1.bf16.msra.mxu0 0
    %440 = vmatprep.subr.bf16.mxu0 0
    %441 = vmatpush1.bf16.msra.mxu0 0
    %442 = vmatprep.subr.bf16.mxu0 0
    %443 = vmatpush1.bf16.msra.mxu0 0
    %444 = vmatprep.subr.bf16.mxu0 0
    %445 = vmatpush1.bf16.msra.mxu0 0
    %446 = vmatprep.subr.bf16.mxu0 0
    %447 = vmatpush1.bf16.msra.mxu0 0
    %448 = vmatprep.subr.bf16.mxu0 0
    %449 = vmatpush1.bf16.msra.mxu0 0
    %450 = vmatprep.subr.bf16.mxu0 0
    %451 = vmatpush1.bf16.msra.mxu0 0
    %452 = vmatprep.mubr.bf16.mxu0 0
    %453 = vmatmul.mubr.bf16.gmra.mrb[0].mxu0 %v241
    %v454 = vpop.f32.mrb[0].mxu0
    %v455 = vadd.f32 0.0, %v454
    %v456 = vpop.f32.mrb[0].mxu0
    %v457 = vpop.f32.mrb[0].mxu0
    %v458 = vadd.f32 0.0, %v457
    %v459 = vpop.f32.mrb[0].mxu0
    %460 = vmatprep.mubr.bf16.mxu0 0
    %461 = vmatmul.mubr.bf16.gmra.mrb[0].mxu0 %v242
    %v462 = vpop.f32.mrb[0].mxu0
    %v463 = vadd.f32 0.0, %v462
    %v464 = vpop.f32.mrb[0].mxu0
    %v465 = vpop.f32.mrb[0].mxu0
    %v466 = vadd.f32 0.0, %v465
    %v467 = vpop.f32.mrb[0].mxu0
    %468 = vdwg.mxu0
    %v469 = vld [vmem:[#allocation8] sm:$0xf]
    %v470 = vld [vmem:[#allocation8 + $0x4] sm:$0xf]
    %v471 = vld [vmem:[#allocation8 + $0x8] sm:$0xf]
    %v472 = vld [vmem:[#allocation8 + $0xc] sm:$0xf]
    %v473 = vld [vmem:[#allocation8 + $0x10] sm:$0xf]
    %v474 = vld [vmem:[#allocation8 + $0x14] sm:$0xf]
    %v475 = vld [vmem:[#allocation8 + $0x18] sm:$0xf]
    %v476 = vld [vmem:[#allocation8 + $0x1c] sm:$0xf]
    %v477 = vld [vmem:[#allocation8 + $0x20] sm:$0xf]
    %v478 = vld [vmem:[#allocation8 + $0x24] sm:$0xf]
    %v479 = vld [vmem:[#allocation8 + $0x28] sm:$0xf]
    %v480 = vld [vmem:[#allocation8 + $0x2c] sm:$0xf]
    %v481 = vld [vmem:[#allocation8 + $0x30] sm:$0xf]
    %v482 = vld [vmem:[#allocation8 + $0x34] sm:$0xf]
    %v483 = vld [vmem:[#allocation8 + $0x38] sm:$0xf]
    %v484 = vld [vmem:[#allocation8 + $0x3c] sm:$0xf]
    %v501 = vunpack.c.l.b16 %v469
    %v502 = vunpack.c.l.b16 %v470
    %v503 = vunpack.c.l.b16 %v471
    %v504 = vunpack.c.l.b16 %v472
    %v505 = vunpack.c.l.b16 %v473
    %v506 = vunpack.c.l.b16 %v474
    %v507 = vunpack.c.l.b16 %v475
    %v508 = vunpack.c.l.b16 %v476
    %v509 = vunpack.c.l.b16 %v477
    %v510 = vunpack.c.l.b16 %v478
    %v511 = vunpack.c.l.b16 %v479
    %v512 = vunpack.c.l.b16 %v480
    %v513 = vunpack.c.l.b16 %v481
    %v514 = vunpack.c.l.b16 %v482
    %v515 = vunpack.c.l.b16 %v483
    %v516 = vunpack.c.l.b16 %v484
    %v517 = vpack.c.b16 %v502, %v501
    %v518 = vpack.c.b16 %v504, %v503
    %v519 = vpack.c.b16 %v506, %v505
    %v520 = vpack.c.b16 %v508, %v507
    %v521 = vpack.c.b16 %v510, %v509
    %v522 = vpack.c.b16 %v512, %v511
    %v523 = vpack.c.b16 %v514, %v513
    %v524 = vpack.c.b16 %v516, %v515
    %533 = vmatprep.subr.bf16.mxu0 0
    %534 = vmatpush1.bf16.msra.mxu0 %v517
    %535 = vmatprep.subr.bf16.mxu0 0
    %536 = vmatpush1.bf16.msra.mxu0 %v518
    %537 = vmatprep.subr.bf16.mxu0 0
    %538 = vmatpush1.bf16.msra.mxu0 %v519
    %539 = vmatprep.subr.bf16.mxu0 0
    %540 = vmatpush1.bf16.msra.mxu0 %v520
    %541 = vmatprep.subr.bf16.mxu0 0
    %542 = vmatpush1.bf16.msra.mxu0 %v521
    %543 = vmatprep.subr.bf16.mxu0 0
    %544 = vmatpush1.bf16.msra.mxu0 %v522
    %545 = vmatprep.subr.bf16.mxu0 0
    %546 = vmatpush1.bf16.msra.mxu0 %v523
    %547 = vmatprep.subr.bf16.mxu0 0
    %548 = vmatpush1.bf16.msra.mxu0 %v524
    %549 = vmatprep.subr.bf16.mxu0 0
    %550 = vmatpush1.bf16.msra.mxu0 0
    %551 = vmatprep.subr.bf16.mxu0 0
    %552 = vmatpush1.bf16.msra.mxu0 0
    %553 = vmatprep.subr.bf16.mxu0 0
    %554 = vmatpush1.bf16.msra.mxu0 0
    %555 = vmatprep.subr.bf16.mxu0 0
    %556 = vmatpush1.bf16.msra.mxu0 0
    %557 = vmatprep.subr.bf16.mxu0 0
    %558 = vmatpush1.bf16.msra.mxu0 0
    %559 = vmatprep.subr.bf16.mxu0 0
    %560 = vmatpush1.bf16.msra.mxu0 0
    %561 = vmatprep.subr.bf16.mxu0 0
    %562 = vmatpush1.bf16.msra.mxu0 0
    %563 = vmatprep.subr.bf16.mxu0 0
    %564 = vmatpush1.bf16.msra.mxu0 0
    %565 = vmatprep.mubr.bf16.mxu0 0
    %566 = vmatmul.mubr.bf16.gmra.mrb[0].mxu0 %v241
    %v567 = vpop.f32.mrb[0].mxu0
    %v568 = vadd.f32 0.0, %v567
    %v569 = vpop.f32.mrb[0].mxu0
    %v570 = vpop.f32.mrb[0].mxu0
    %v571 = vadd.f32 0.0, %v570
    %v572 = vpop.f32.mrb[0].mxu0
    %573 = vmatprep.mubr.bf16.mxu0 0
    %574 = vmatmul.mubr.bf16.gmra.mrb[0].mxu0 %v242
    %v575 = vpop.f32.mrb[0].mxu0
    %v576 = vadd.f32 0.0, %v575
    %v577 = vpop.f32.mrb[0].mxu0
    %v578 = vpop.f32.mrb[0].mxu0
    %v579 = vadd.f32 0.0, %v578
    %v580 = vpop.f32.mrb[0].mxu0
    %581 = vdwg.mxu0
    %v582 = vpack.c.bf16 %v345, %v342
    %v583 = vpack.c.bf16 %v353, %v350
    %v584 = vpack.c.bf16 %v458, %v455
    %v585 = vpack.c.bf16 %v466, %v463
    %v586 = vpack.c.bf16 %v571, %v568
    %v587 = vpack.c.bf16 %v579, %v576
    %vm588 = vcmask 261120
    %v590 = vsel %vm588, %v582, 0
    %v593 = vsel %vm588, %v584, 0
    %595 = vmatprep.subr.bf16.mxu0 0
    %596 = vmatpush1.bf16.xpose.msra.mxu0 %v593
    %597 = vmatprep.subr.bf16.mxu0 0
    %598 = vmatpush1.bf16.xpose.msra.mxu0 0
    %599 = vmatprep.subr.bf16.mxu0 0
    %600 = vmatpush1.bf16.xpose.msra.mxu0 0
    %601 = vmatprep.subr.bf16.mxu0 0
    %602 = vmatpush1.bf16.xpose.msra.mxu0 0
    %603 = vmatprep.subr.bf16.mxu0 0
    %604 = vmatpush1.bf16.xpose.msra.mxu0 0
    %605 = vmatprep.subr.bf16.mxu0 0
    %606 = vmatpush1.bf16.xpose.msra.mxu0 0
    %607 = vmatprep.subr.bf16.mxu0 0
    %608 = vmatpush1.bf16.xpose.msra.mxu0 0
    %609 = vmatprep.subr.bf16.mxu0 0
    %610 = vmatpush1.bf16.xpose.msra.mxu0 0
    %611 = vmatprep.subr.bf16.mxu0 0
    %612 = vmatpush1.bf16.xpose.msra.mxu0 0
    %613 = vmatprep.subr.bf16.mxu0 0
    %614 = vmatpush1.bf16.xpose.msra.mxu0 0
    %615 = vmatprep.subr.bf16.mxu0 0
    %616 = vmatpush1.bf16.xpose.msra.mxu0 0
    %617 = vmatprep.subr.bf16.mxu0 0
    %618 = vmatpush1.bf16.xpose.msra.mxu0 0
    %619 = vmatprep.subr.bf16.mxu0 0
    %620 = vmatpush1.bf16.xpose.msra.mxu0 0
    %621 = vmatprep.subr.bf16.mxu0 0
    %622 = vmatpush1.bf16.xpose.msra.mxu0 0
    %623 = vmatprep.subr.bf16.mxu0 0
    %624 = vmatpush1.bf16.xpose.msra.mxu0 0
    %625 = vmatprep.subr.bf16.mxu0 0
    %626 = vmatpush1.bf16.xpose.msra.mxu0 0
    %627 = vmatprep.mubr.bf16.mxu0 0
    %628 = vmatmul.mubr.bf16.gmra.mrb[0].mxu0 %v590
    %v629 = vpop.f32.mrb[0].mxu0
    %v630 = vadd.f32 0.0, %v629
    %v631 = vpop.f32.mrb[0].mxu0
    %v632 = vpop.f32.mrb[0].mxu0
    %v633 = vadd.f32 0.0, %v632
    %v634 = vpop.f32.mrb[0].mxu0
    %635 = vdwg.mxu0
    %v637 = vsel %vm588, %v583, 0
    %v640 = vsel %vm588, %v585, 0
    %642 = vmatprep.subr.bf16.mxu0 0
    %643 = vmatpush1.bf16.xpose.msra.mxu0 %v640
    %644 = vmatprep.subr.bf16.mxu0 0
    %645 = vmatpush1.bf16.xpose.msra.mxu0 0
    %646 = vmatprep.subr.bf16.mxu0 0
    %647 = vmatpush1.bf16.xpose.msra.mxu0 0
    %648 = vmatprep.subr.bf16.mxu0 0
    %649 = vmatpush1.bf16.xpose.msra.mxu0 0
    %650 = vmatprep.subr.bf16.mxu0 0
    %651 = vmatpush1.bf16.xpose.msra.mxu0 0
    %652 = vmatprep.subr.bf16.mxu0 0
    %653 = vmatpush1.bf16.xpose.msra.mxu0 0
    %654 = vmatprep.subr.bf16.mxu0 0
    %655 = vmatpush1.bf16.xpose.msra.mxu0 0
    %656 = vmatprep.subr.bf16.mxu0 0
    %657 = vmatpush1.bf16.xpose.msra.mxu0 0
    %658 = vmatprep.subr.bf16.mxu0 0
    %659 = vmatpush1.bf16.xpose.msra.mxu0 0
    %660 = vmatprep.subr.bf16.mxu0 0
    %661 = vmatpush1.bf16.xpose.msra.mxu0 0
    %662 = vmatprep.subr.bf16.mxu0 0
    %663 = vmatpush1.bf16.xpose.msra.mxu0 0
    %664 = vmatprep.subr.bf16.mxu0 0
    %665 = vmatpush1.bf16.xpose.msra.mxu0 0
    %666 = vmatprep.subr.bf16.mxu0 0
    %667 = vmatpush1.bf16.xpose.msra.mxu0 0
    %668 = vmatprep.subr.bf16.mxu0 0
    %669 = vmatpush1.bf16.xpose.msra.mxu0 0
    %670 = vmatprep.subr.bf16.mxu0 0
    %671 = vmatpush1.bf16.xpose.msra.mxu0 0
    %672 = vmatprep.subr.bf16.mxu0 0
    %673 = vmatpush1.bf16.xpose.msra.mxu0 0
    %674 = vmatprep.mubr.bf16.mxu0 0
    %675 = vmatmul.mubr.bf16.gmra.mrb[0].mxu0 %v637
    %v676 = vpop.f32.mrb[0].mxu0
    %v677 = vadd.f32 0.0, %v676
    %v678 = vpop.f32.mrb[0].mxu0
    %v679 = vpop.f32.mrb[0].mxu0
    %v680 = vadd.f32 0.0, %v679
    %v681 = vpop.f32.mrb[0].mxu0
    %682 = vdwg.mxu0
    %vm683 = vcmask 130048
    %v684 = vsel %vm683, %v630, -inf
    %685 = vmax.xlane.f32.xlu0 %v684
    %v686 = vpop.xlane.xlu0 %685
    %v687 = vsel %vm683, %v633, -inf
    %688 = vmax.xlane.f32.xlu0 %v687
    %v689 = vpop.xlane.xlu0 %688
    %v690 = vsel %vm683, %v677, -inf
    %691 = vmax.xlane.f32.xlu0 %v690
    %v692 = vpop.xlane.xlu0 %691
    %v693 = vsel %vm683, %v680, -inf
    %694 = vmax.xlane.f32.xlu0 %v693
    %v695 = vpop.xlane.xlu0 %694
    %v696 = vsub.f32 %v630, %v686
    %v697 = vsub.f32 %v633, %v689
    %v698 = vsub.f32 %v677, %v692
    %v699 = vsub.f32 %v680, %v695
    %v700 = vmul.f32 %v696, 1.442695
    %v701 = vpow.pop %v700
    %v702 = vmul.f32 %v697, 1.442695
    %v703 = vpow.pop %v702
    %v704 = vmul.f32 %v698, 1.442695
    %v705 = vpow.pop %v704
    %v706 = vmul.f32 %v699, 1.442695
    %v707 = vpow.pop %v706
    %v708 = vsel %vm683, %v701, 0.0
    %709 = vadd.xlane.f32.xlu0 %v708
    %v710 = vpop.xlane.xlu0 %709
    %v711 = vsel %vm683, %v703, 0.0
    %712 = vadd.xlane.f32.xlu0 %v711
    %v713 = vpop.xlane.xlu0 %712
    %v714 = vsel %vm683, %v705, 0.0
    %715 = vadd.xlane.f32.xlu0 %v714
    %v716 = vpop.xlane.xlu0 %715
    %v717 = vsel %vm683, %v707, 0.0
    %718 = vadd.xlane.f32.xlu0 %v717
    %v719 = vpop.xlane.xlu0 %718
    %v720 = vrcp.pop %v710
    %v721 = vrcp.pop %v713
    %v722 = vrcp.pop %v716
    %v723 = vrcp.pop %v719
    %v724 = vmul.f32 %v701, %v720
    %v725 = vmul.f32 %v703, %v721
    %v726 = vmul.f32 %v705, %v722
    %v727 = vmul.f32 %v707, %v723
    %v728 = vpack.c.bf16 %v725, %v724
    %v729 = vpack.c.bf16 %v727, %v726
    %v731 = vsel %vm683, %v728, 0
    %733 = vmatprep.subr.bf16.mxu0 0
    %734 = vmatpush1.bf16.msra.mxu0 %v586
    %735 = vmatprep.subr.bf16.mxu0 0
    %736 = vmatpush1.bf16.msra.mxu0 0
    %737 = vmatprep.subr.bf16.mxu0 0
    %738 = vmatpush1.bf16.msra.mxu0 0
    %739 = vmatprep.subr.bf16.mxu0 0
    %740 = vmatpush1.bf16.msra.mxu0 0
    %741 = vmatprep.subr.bf16.mxu0 0
    %742 = vmatpush1.bf16.msra.mxu0 0
    %743 = vmatprep.subr.bf16.mxu0 0
    %744 = vmatpush1.bf16.msra.mxu0 0
    %745 = vmatprep.subr.bf16.mxu0 0
    %746 = vmatpush1.bf16.msra.mxu0 0
    %747 = vmatprep.subr.bf16.mxu0 0
    %748 = vmatpush1.bf16.msra.mxu0 0
    %749 = vmatprep.subr.bf16.mxu0 0
    %750 = vmatpush1.bf16.msra.mxu0 0
    %751 = vmatprep.subr.bf16.mxu0 0
    %752 = vmatpush1.bf16.msra.mxu0 0
    %753 = vmatprep.subr.bf16.mxu0 0
    %754 = vmatpush1.bf16.msra.mxu0 0
    %755 = vmatprep.subr.bf16.mxu0 0
    %756 = vmatpush1.bf16.msra.mxu0 0
    %757 = vmatprep.subr.bf16.mxu0 0
    %758 = vmatpush1.bf16.msra.mxu0 0
    %759 = vmatprep.subr.bf16.mxu0 0
    %760 = vmatpush1.bf16.msra.mxu0 0
    %761 = vmatprep.subr.bf16.mxu0 0
    %762 = vmatpush1.bf16.msra.mxu0 0
    %763 = vmatprep.subr.bf16.mxu0 0
    %764 = vmatpush1.bf16.msra.mxu0 0
    %765 = vmatprep.mubr.bf16.mxu0 0
    %766 = vmatmul.mubr.bf16.gmra.mrb[0].mxu0 %v731
    %v767 = vpop.f32.mrb[0].mxu0
    %v768 = vadd.f32 0.0, %v767
    %v769 = vpop.f32.mrb[0].mxu0
    %v770 = vpop.f32.mrb[0].mxu0
    %v771 = vadd.f32 0.0, %v770
    %v772 = vpop.f32.mrb[0].mxu0
    %773 = vdwg.mxu0
    %v775 = vsel %vm683, %v729, 0
    %777 = vmatprep.subr.bf16.mxu0 0
    %778 = vmatpush1.bf16.msra.mxu0 %v587
    %779 = vmatprep.subr.bf16.mxu0 0
    %780 = vmatpush1.bf16.msra.mxu0 0
    %781 = vmatprep.subr.bf16.mxu0 0
    %782 = vmatpush1.bf16.msra.mxu0 0
    %783 = vmatprep.subr.bf16.mxu0 0
    %784 = vmatpush1.bf16.msra.mxu0 0
    %785 = vmatprep.subr.bf16.mxu0 0
    %786 = vmatpush1.bf16.msra.mxu0 0
    %787 = vmatprep.subr.bf16.mxu0 0
    %788 = vmatpush1.bf16.msra.mxu0 0
    %789 = vmatprep.subr.bf16.mxu0 0
    %790 = vmatpush1.bf16.msra.mxu0 0
    %791 = vmatprep.subr.bf16.mxu0 0
    %792 = vmatpush1.bf16.msra.mxu0 0
    %793 = vmatprep.subr.bf16.mxu0 0
    %794 = vmatpush1.bf16.msra.mxu0 0
    %795 = vmatprep.subr.bf16.mxu0 0
    %796 = vmatpush1.bf16.msra.mxu0 0
    %797 = vmatprep.subr.bf16.mxu0 0
    %798 = vmatpush1.bf16.msra.mxu0 0
    %799 = vmatprep.subr.bf16.mxu0 0
    %800 = vmatpush1.bf16.msra.mxu0 0
    %801 = vmatprep.subr.bf16.mxu0 0
    %802 = vmatpush1.bf16.msra.mxu0 0
    %803 = vmatprep.subr.bf16.mxu0 0
    %804 = vmatpush1.bf16.msra.mxu0 0
    %805 = vmatprep.subr.bf16.mxu0 0
    %806 = vmatpush1.bf16.msra.mxu0 0
    %807 = vmatprep.subr.bf16.mxu0 0
    %808 = vmatpush1.bf16.msra.mxu0 0
    %809 = vmatprep.mubr.bf16.mxu0 0
    %810 = vmatmul.mubr.bf16.gmra.mrb[0].mxu0 %v775
    %v811 = vpop.f32.mrb[0].mxu0
    %v812 = vadd.f32 0.0, %v811
    %v813 = vpop.f32.mrb[0].mxu0
    %v814 = vpop.f32.mrb[0].mxu0
    %v815 = vadd.f32 0.0, %v814
    %v816 = vpop.f32.mrb[0].mxu0
    %817 = vdwg.mxu0
    %819 = vrot.lane.b32.xlu0 %v582, 96
    %v820 = vpop.permute.xlu0 %819
    %822 = vrot.lane.b32.xlu0 %v584, 96
    %v823 = vpop.permute.xlu0 %822
    %v825 = vsel %vm588, %v820, 0
    %v828 = vsel %vm588, %v823, 0
    %830 = vmatprep.subr.bf16.mxu0 0
    %831 = vmatpush1.bf16.xpose.msra.mxu0 %v828
    %832 = vmatprep.subr.bf16.mxu0 0
    %833 = vmatpush1.bf16.xpose.msra.mxu0 0
    %834 = vmatprep.subr.bf16.mxu0 0
    %835 = vmatpush1.bf16.xpose.msra.mxu0 0
    %836 = vmatprep.subr.bf16.mxu0 0
    %837 = vmatpush1.bf16.xpose.msra.mxu0 0
    %838 = vmatprep.subr.bf16.mxu0 0
    %839 = vmatpush1.bf16.xpose.msra.mxu0 0
    %840 = vmatprep.subr.bf16.mxu0 0
    %841 = vmatpush1.bf16.xpose.msra.mxu0 0
    %842 = vmatprep.subr.bf16.mxu0 0
    %843 = vmatpush1.bf16.xpose.msra.mxu0 0
    %844 = vmatprep.subr.bf16.mxu0 0
    %845 = vmatpush1.bf16.xpose.msra.mxu0 0
    %846 = vmatprep.subr.bf16.mxu0 0
    %847 = vmatpush1.bf16.xpose.msra.mxu0 0
    %848 = vmatprep.subr.bf16.mxu0 0
    %849 = vmatpush1.bf16.xpose.msra.mxu0 0
    %850 = vmatprep.subr.bf16.mxu0 0
    %851 = vmatpush1.bf16.xpose.msra.mxu0 0
    %852 = vmatprep.subr.bf16.mxu0 0
    %853 = vmatpush1.bf16.xpose.msra.mxu0 0
    %854 = vmatprep.subr.bf16.mxu0 0
    %855 = vmatpush1.bf16.xpose.msra.mxu0 0
    %856 = vmatprep.subr.bf16.mxu0 0
    %857 = vmatpush1.bf16.xpose.msra.mxu0 0
    %858 = vmatprep.subr.bf16.mxu0 0
    %859 = vmatpush1.bf16.xpose.msra.mxu0 0
    %860 = vmatprep.subr.bf16.mxu0 0
    %861 = vmatpush1.bf16.xpose.msra.mxu0 0
    %862 = vmatprep.mubr.bf16.mxu0 0
    %863 = vmatmul.mubr.bf16.gmra.mrb[0].mxu0 %v825
    %v864 = vpop.f32.mrb[0].mxu0
    %v865 = vadd.f32 0.0, %v864
    %v866 = vpop.f32.mrb[0].mxu0
    %v867 = vpop.f32.mrb[0].mxu0
    %v868 = vadd.f32 0.0, %v867
    %v869 = vpop.f32.mrb[0].mxu0
    %870 = vdwg.mxu0
    %872 = vrot.lane.b32.xlu0 %v583, 96
    %v873 = vpop.permute.xlu0 %872
    %875 = vrot.lane.b32.xlu0 %v585, 96
    %v876 = vpop.permute.xlu0 %875
    %v878 = vsel %vm588, %v873, 0
    %v881 = vsel %vm588, %v876, 0
    %883 = vmatprep.subr.bf16.mxu0 0
    %884 = vmatpush1.bf16.xpose.msra.mxu0 %v881
    %885 = vmatprep.subr.bf16.mxu0 0
    %886 = vmatpush1.bf16.xpose.msra.mxu0 0
    %887 = vmatprep.subr.bf16.mxu0 0
    %888 = vmatpush1.bf16.xpose.msra.mxu0 0
    %889 = vmatprep.subr.bf16.mxu0 0
    %890 = vmatpush1.bf16.xpose.msra.mxu0 0
    %891 = vmatprep.subr.bf16.mxu0 0
    %892 = vmatpush1.bf16.xpose.msra.mxu0 0
    %893 = vmatprep.subr.bf16.mxu0 0
    %894 = vmatpush1.bf16.xpose.msra.mxu0 0
    %895 = vmatprep.subr.bf16.mxu0 0
    %896 = vmatpush1.bf16.xpose.msra.mxu0 0
    %897 = vmatprep.subr.bf16.mxu0 0
    %898 = vmatpush1.bf16.xpose.msra.mxu0 0
    %899 = vmatprep.subr.bf16.mxu0 0
    %900 = vmatpush1.bf16.xpose.msra.mxu0 0
    %901 = vmatprep.subr.bf16.mxu0 0
    %902 = vmatpush1.bf16.xpose.msra.mxu0 0
    %903 = vmatprep.subr.bf16.mxu0 0
    %904 = vmatpush1.bf16.xpose.msra.mxu0 0
    %905 = vmatprep.subr.bf16.mxu0 0
    %906 = vmatpush1.bf16.xpose.msra.mxu0 0
    %907 = vmatprep.subr.bf16.mxu0 0
    %908 = vmatpush1.bf16.xpose.msra.mxu0 0
    %909 = vmatprep.subr.bf16.mxu0 0
    %910 = vmatpush1.bf16.xpose.msra.mxu0 0
    %911 = vmatprep.subr.bf16.mxu0 0
    %912 = vmatpush1.bf16.xpose.msra.mxu0 0
    %913 = vmatprep.subr.bf16.mxu0 0
    %914 = vmatpush1.bf16.xpose.msra.mxu0 0
    %915 = vmatprep.mubr.bf16.mxu0 0
    %916 = vmatmul.mubr.bf16.gmra.mrb[0].mxu0 %v878
    %v917 = vpop.f32.mrb[0].mxu0
    %v918 = vadd.f32 0.0, %v917
    %v919 = vpop.f32.mrb[0].mxu0
    %v920 = vpop.f32.mrb[0].mxu0
    %v921 = vadd.f32 0.0, %v920
    %v922 = vpop.f32.mrb[0].mxu0
    %923 = vdwg.mxu0
    %v924 = vsel %vm683, %v865, -inf
    %925 = vmax.xlane.f32.xlu0 %v924
    %v926 = vpop.xlane.xlu0 %925
    %v927 = vsel %vm683, %v868, -inf
    %928 = vmax.xlane.f32.xlu0 %v927
    %v929 = vpop.xlane.xlu0 %928
    %v930 = vsel %vm683, %v918, -inf
    %931 = vmax.xlane.f32.xlu0 %v930
    %v932 = vpop.xlane.xlu0 %931
    %v933 = vsel %vm683, %v921, -inf
    %934 = vmax.xlane.f32.xlu0 %v933
    %v935 = vpop.xlane.xlu0 %934
    %v936 = vsub.f32 %v865, %v926
    %v937 = vsub.f32 %v868, %v929
    %v938 = vsub.f32 %v918, %v932
    %v939 = vsub.f32 %v921, %v935
    %v940 = vmul.f32 %v936, 1.442695
    %v941 = vpow.pop %v940
    %v942 = vmul.f32 %v937, 1.442695
    %v943 = vpow.pop %v942
    %v944 = vmul.f32 %v938, 1.442695
    %v945 = vpow.pop %v944
    %v946 = vmul.f32 %v939, 1.442695
    %v947 = vpow.pop %v946
    %v948 = vsel %vm683, %v941, 0.0
    %949 = vadd.xlane.f32.xlu0 %v948
    %v950 = vpop.xlane.xlu0 %949
    %v951 = vsel %vm683, %v943, 0.0
    %952 = vadd.xlane.f32.xlu0 %v951
    %v953 = vpop.xlane.xlu0 %952
    %v954 = vsel %vm683, %v945, 0.0
    %955 = vadd.xlane.f32.xlu0 %v954
    %v956 = vpop.xlane.xlu0 %955
    %v957 = vsel %vm683, %v947, 0.0
    %958 = vadd.xlane.f32.xlu0 %v957
    %v959 = vpop.xlane.xlu0 %958
    %v960 = vrcp.pop %v950
    %v961 = vrcp.pop %v953
    %v962 = vrcp.pop %v956
    %v963 = vrcp.pop %v959
    %v964 = vmul.f32 %v941, %v960
    %v965 = vmul.f32 %v943, %v961
    %v966 = vmul.f32 %v945, %v962
    %v967 = vmul.f32 %v947, %v963
    %v968 = vpack.c.bf16 %v965, %v964
    %v969 = vpack.c.bf16 %v967, %v966
    %971 = vrot.lane.b32.xlu0 %v586, 96
    %v972 = vpop.permute.xlu0 %971
    %v975 = vsel %vm683, %v968, 0
    %977 = vmatprep.subr.bf16.mxu0 0
    %978 = vmatpush1.bf16.msra.mxu0 %v972
    %979 = vmatprep.subr.bf16.mxu0 0
    %980 = vmatpush1.bf16.msra.mxu0 0
    %981 = vmatprep.subr.bf16.mxu0 0
    %982 = vmatpush1.bf16.msra.mxu0 0
    %983 = vmatprep.subr.bf16.mxu0 0
    %984 = vmatpush1.bf16.msra.mxu0 0
    %985 = vmatprep.subr.bf16.mxu0 0
    %986 = vmatpush1.bf16.msra.mxu0 0
    %987 = vmatprep.subr.bf16.mxu0 0
    %988 = vmatpush1.bf16.msra.mxu0 0
    %989 = vmatprep.subr.bf16.mxu0 0
    %990 = vmatpush1.bf16.msra.mxu0 0
    %991 = vmatprep.subr.bf16.mxu0 0
    %992 = vmatpush1.bf16.msra.mxu0 0
    %993 = vmatprep.subr.bf16.mxu0 0
    %994 = vmatpush1.bf16.msra.mxu0 0
    %995 = vmatprep.subr.bf16.mxu0 0
    %996 = vmatpush1.bf16.msra.mxu0 0
    %997 = vmatprep.subr.bf16.mxu0 0
    %998 = vmatpush1.bf16.msra.mxu0 0
    %999 = vmatprep.subr.bf16.mxu0 0
    %1000 = vmatpush1.bf16.msra.mxu0 0
    %1001 = vmatprep.subr.bf16.mxu0 0
    %1002 = vmatpush1.bf16.msra.mxu0 0
    %1003 = vmatprep.subr.bf16.mxu0 0
    %1004 = vmatpush1.bf16.msra.mxu0 0
    %1005 = vmatprep.subr.bf16.mxu0 0
    %1006 = vmatpush1.bf16.msra.mxu0 0
    %1007 = vmatprep.subr.bf16.mxu0 0
    %1008 = vmatpush1.bf16.msra.mxu0 0
    %1009 = vmatprep.mubr.bf16.mxu0 0
    %1010 = vmatmul.mubr.bf16.gmra.mrb[0].mxu0 %v975
    %v1011 = vpop.f32.mrb[0].mxu0
    %v1012 = vadd.f32 0.0, %v1011
    %v1013 = vpop.f32.mrb[0].mxu0
    %v1014 = vpop.f32.mrb[0].mxu0
    %v1015 = vadd.f32 0.0, %v1014
    %v1016 = vpop.f32.mrb[0].mxu0
    %1017 = vdwg.mxu0
    %1019 = vrot.lane.b32.xlu0 %v587, 96
    %v1020 = vpop.permute.xlu0 %1019
    %v1023 = vsel %vm683, %v969, 0
    %1025 = vmatprep.subr.bf16.mxu0 0
    %1026 = vmatpush1.bf16.msra.mxu0 %v1020
    %1027 = vmatprep.subr.bf16.mxu0 0
    %1028 = vmatpush1.bf16.msra.mxu0 0
    %1029 = vmatprep.subr.bf16.mxu0 0
    %1030 = vmatpush1.bf16.msra.mxu0 0
    %1031 = vmatprep.subr.bf16.mxu0 0
    %1032 = vmatpush1.bf16.msra.mxu0 0
    %1033 = vmatprep.subr.bf16.mxu0 0
    %1034 = vmatpush1.bf16.msra.mxu0 0
    %1035 = vmatprep.subr.bf16.mxu0 0
    %1036 = vmatpush1.bf16.msra.mxu0 0
    %1037 = vmatprep.subr.bf16.mxu0 0
    %1038 = vmatpush1.bf16.msra.mxu0 0
    %1039 = vmatprep.subr.bf16.mxu0 0
    %1040 = vmatpush1.bf16.msra.mxu0 0
    %1041 = vmatprep.subr.bf16.mxu0 0
    %1042 = vmatpush1.bf16.msra.mxu0 0
    %1043 = vmatprep.subr.bf16.mxu0 0
    %1044 = vmatpush1.bf16.msra.mxu0 0
    %1045 = vmatprep.subr.bf16.mxu0 0
    %1046 = vmatpush1.bf16.msra.mxu0 0
    %1047 = vmatprep.subr.bf16.mxu0 0
    %1048 = vmatpush1.bf16.msra.mxu0 0
    %1049 = vmatprep.subr.bf16.mxu0 0
    %1050 = vmatpush1.bf16.msra.mxu0 0
    %1051 = vmatprep.subr.bf16.mxu0 0
    %1052 = vmatpush1.bf16.msra.mxu0 0
    %1053 = vmatprep.subr.bf16.mxu0 0
    %1054 = vmatpush1.bf16.msra.mxu0 0
    %1055 = vmatprep.subr.bf16.mxu0 0
    %1056 = vmatpush1.bf16.msra.mxu0 0
    %1057 = vmatprep.mubr.bf16.mxu0 0
    %1058 = vmatmul.mubr.bf16.gmra.mrb[0].mxu0 %v1023
    %v1059 = vpop.f32.mrb[0].mxu0
    %v1060 = vadd.f32 0.0, %v1059
    %v1061 = vpop.f32.mrb[0].mxu0
    %v1062 = vpop.f32.mrb[0].mxu0
    %v1063 = vadd.f32 0.0, %v1062
    %v1064 = vpop.f32.mrb[0].mxu0
    %1065 = vdwg.mxu0
    %1066 = vrot.lane.b32.xlu0 %v582, 64
    %v1067 = vpop.permute.xlu0 %1066
    %1068 = vrot.lane.b32.xlu0 %v584, 64
    %v1069 = vpop.permute.xlu0 %1068
    %v1071 = vsel %vm588, %v1067, 0
    %v1074 = vsel %vm588, %v1069, 0
    %1076 = vmatprep.subr.bf16.mxu0 0
    %1077 = vmatpush1.bf16.xpose.msra.mxu0 %v1074
    %1078 = vmatprep.subr.bf16.mxu0 0
    %1079 = vmatpush1.bf16.xpose.msra.mxu0 0
    %1080 = vmatprep.subr.bf16.mxu0 0
    %1081 = vmatpush1.bf16.xpose.msra.mxu0 0
    %1082 = vmatprep.subr.bf16.mxu0 0
    %1083 = vmatpush1.bf16.xpose.msra.mxu0 0
    %1084 = vmatprep.subr.bf16.mxu0 0
    %1085 = vmatpush1.bf16.xpose.msra.mxu0 0
    %1086 = vmatprep.subr.bf16.mxu0 0
    %1087 = vmatpush1.bf16.xpose.msra.mxu0 0
    %1088 = vmatprep.subr.bf16.mxu0 0
    %1089 = vmatpush1.bf16.xpose.msra.mxu0 0
    %1090 = vmatprep.subr.bf16.mxu0 0
    %1091 = vmatpush1.bf16.xpose.msra.mxu0 0
    %1092 = vmatprep.subr.bf16.mxu0 0
    %1093 = vmatpush1.bf16.xpose.msra.mxu0 0
    %1094 = vmatprep.subr.bf16.mxu0 0
    %1095 = vmatpush1.bf16.xpose.msra.mxu0 0
    %1096 = vmatprep.subr.bf16.mxu0 0
    %1097 = vmatpush1.bf16.xpose.msra.mxu0 0
    %1098 = vmatprep.subr.bf16.mxu0 0
    %1099 = vmatpush1.bf16.xpose.msra.mxu0 0
    %1100 = vmatprep.subr.bf16.mxu0 0
    %1101 = vmatpush1.bf16.xpose.msra.mxu0 0
    %1102 = vmatprep.subr.bf16.mxu0 0
    %1103 = vmatpush1.bf16.xpose.msra.mxu0 0
    %1104 = vmatprep.subr.bf16.mxu0 0
    %1105 = vmatpush1.bf16.xpose.msra.mxu0 0
    %1106 = vmatprep.subr.bf16.mxu0 0
    %1107 = vmatpush1.bf16.xpose.msra.mxu0 0
    %1108 = vmatprep.mubr.bf16.mxu0 0
    %1109 = vmatmul.mubr.bf16.gmra.mrb[0].mxu0 %v1071
    %v1110 = vpop.f32.mrb[0].mxu0
    %v1111 = vadd.f32 0.0, %v1110
    %v1112 = vpop.f32.mrb[0].mxu0
    %v1113 = vpop.f32.mrb[0].mxu0
    %v1114 = vadd.f32 0.0, %v1113
    %v1115 = vpop.f32.mrb[0].mxu0
    %1116 = vdwg.mxu0
    %1117 = vrot.lane.b32.xlu0 %v583, 64
    %v1118 = vpop.permute.xlu0 %1117
    %1119 = vrot.lane.b32.xlu0 %v585, 64
    %v1120 = vpop.permute.xlu0 %1119
    %v1122 = vsel %vm588, %v1118, 0
    %v1125 = vsel %vm588, %v1120, 0
    %1127 = vmatprep.subr.bf16.mxu0 0
    %1128 = vmatpush1.bf16.xpose.msra.mxu0 %v1125
    %1129 = vmatprep.subr.bf16.mxu0 0
    %1130 = vmatpush1.bf16.xpose.msra.mxu0 0
    %1131 = vmatprep.subr.bf16.mxu0 0
    %1132 = vmatpush1.bf16.xpose.msra.mxu0 0
    %1133 = vmatprep.subr.bf16.mxu0 0
    %1134 = vmatpush1.bf16.xpose.msra.mxu0 0
    %1135 = vmatprep.subr.bf16.mxu0 0
    %1136 = vmatpush1.bf16.xpose.msra.mxu0 0
    %1137 = vmatprep.subr.bf16.mxu0 0
    %1138 = vmatpush1.bf16.xpose.msra.mxu0 0
    %1139 = vmatprep.subr.bf16.mxu0 0
    %1140 = vmatpush1.bf16.xpose.msra.mxu0 0
    %1141 = vmatprep.subr.bf16.mxu0 0
    %1142 = vmatpush1.bf16.xpose.msra.mxu0 0
    %1143 = vmatprep.subr.bf16.mxu0 0
    %1144 = vmatpush1.bf16.xpose.msra.mxu0 0
    %1145 = vmatprep.subr.bf16.mxu0 0
    %1146 = vmatpush1.bf16.xpose.msra.mxu0 0
    %1147 = vmatprep.subr.bf16.mxu0 0
    %1148 = vmatpush1.bf16.xpose.msra.mxu0 0
    %1149 = vmatprep.subr.bf16.mxu0 0
    %1150 = vmatpush1.bf16.xpose.msra.mxu0 0
    %1151 = vmatprep.subr.bf16.mxu0 0
    %1152 = vmatpush1.bf16.xpose.msra.mxu0 0
    %1153 = vmatprep.subr.bf16.mxu0 0
    %1154 = vmatpush1.bf16.xpose.msra.mxu0 0
    %1155 = vmatprep.subr.bf16.mxu0 0
    %1156 = vmatpush1.bf16.xpose.msra.mxu0 0
    %1157 = vmatprep.subr.bf16.mxu0 0
    %1158 = vmatpush1.bf16.xpose.msra.mxu0 0
    %1159 = vmatprep.mubr.bf16.mxu0 0
    %1160 = vmatmul.mubr.bf16.gmra.mrb[0].mxu0 %v1122
    %v1161 = vpop.f32.mrb[0].mxu0
    %v1162 = vadd.f32 0.0, %v1161
    %v1163 = vpop.f32.mrb[0].mxu0
    %v1164 = vpop.f32.mrb[0].mxu0
    %v1165 = vadd.f32 0.0, %v1164
    %v1166 = vpop.f32.mrb[0].mxu0
    %1167 = vdwg.mxu0
    %v1168 = vsel %vm683, %v1111, -inf
    %1169 = vmax.xlane.f32.xlu0 %v1168
    %v1170 = vpop.xlane.xlu0 %1169
    %v1171 = vsel %vm683, %v1114, -inf
    %1172 = vmax.xlane.f32.xlu0 %v1171
    %v1173 = vpop.xlane.xlu0 %1172
    %v1174 = vsel %vm683, %v1162, -inf
    %1175 = vmax.xlane.f32.xlu0 %v1174
    %v1176 = vpop.xlane.xlu0 %1175
    %v1177 = vsel %vm683, %v1165, -inf
    %1178 = vmax.xlane.f32.xlu0 %v1177
    %v1179 = vpop.xlane.xlu0 %1178
    %v1180 = vsub.f32 %v1111, %v1170
    %v1181 = vsub.f32 %v1114, %v1173
    %v1182 = vsub.f32 %v1162, %v1176
    %v1183 = vsub.f32 %v1165, %v1179
    %v1184 = vmul.f32 %v1180, 1.442695
    %v1185 = vpow.pop %v1184
    %v1186 = vmul.f32 %v1181, 1.442695
    %v1187 = vpow.pop %v1186
    %v1188 = vmul.f32 %v1182, 1.442695
    %v1189 = vpow.pop %v1188
    %v1190 = vmul.f32 %v1183, 1.442695
    %v1191 = vpow.pop %v1190
    %v1192 = vsel %vm683, %v1185, 0.0
    %1193 = vadd.xlane.f32.xlu0 %v1192
    %v1194 = vpop.xlane.xlu0 %1193
    %v1195 = vsel %vm683, %v1187, 0.0
    %1196 = vadd.xlane.f32.xlu0 %v1195
    %v1197 = vpop.xlane.xlu0 %1196
    %v1198 = vsel %vm683, %v1189, 0.0
    %1199 = vadd.xlane.f32.xlu0 %v1198
    %v1200 = vpop.xlane.xlu0 %1199
    %v1201 = vsel %vm683, %v1191, 0.0
    %1202 = vadd.xlane.f32.xlu0 %v1201
    %v1203 = vpop.xlane.xlu0 %1202
    %v1204 = vrcp.pop %v1194
    %v1205 = vrcp.pop %v1197
    %v1206 = vrcp.pop %v1200
    %v1207 = vrcp.pop %v1203
    %v1208 = vmul.f32 %v1185, %v1204
    %v1209 = vmul.f32 %v1187, %v1205
    %v1210 = vmul.f32 %v1189, %v1206
    %v1211 = vmul.f32 %v1191, %v1207
    %v1212 = vpack.c.bf16 %v1209, %v1208
    %v1213 = vpack.c.bf16 %v1211, %v1210
    %1214 = vrot.lane.b32.xlu0 %v586, 64
    %v1215 = vpop.permute.xlu0 %1214
    %v1218 = vsel %vm683, %v1212, 0
    %1220 = vmatprep.subr.bf16.mxu0 0
    %1221 = vmatpush1.bf16.msra.mxu0 %v1215
    %1222 = vmatprep.subr.bf16.mxu0 0
    %1223 = vmatpush1.bf16.msra.mxu0 0
    %1224 = vmatprep.subr.bf16.mxu0 0
    %1225 = vmatpush1.bf16.msra.mxu0 0
    %1226 = vmatprep.subr.bf16.mxu0 0
    %1227 = vmatpush1.bf16.msra.mxu0 0
    %1228 = vmatprep.subr.bf16.mxu0 0
    %1229 = vmatpush1.bf16.msra.mxu0 0
    %1230 = vmatprep.subr.bf16.mxu0 0
    %1231 = vmatpush1.bf16.msra.mxu0 0
    %1232 = vmatprep.subr.bf16.mxu0 0
    %1233 = vmatpush1.bf16.msra.mxu0 0
    %1234 = vmatprep.subr.bf16.mxu0 0
    %1235 = vmatpush1.bf16.msra.mxu0 0
    %1236 = vmatprep.subr.bf16.mxu0 0
    %1237 = vmatpush1.bf16.msra.mxu0 0
    %1238 = vmatprep.subr.bf16.mxu0 0
    %1239 = vmatpush1.bf16.msra.mxu0 0
    %1240 = vmatprep.subr.bf16.mxu0 0
    %1241 = vmatpush1.bf16.msra.mxu0 0
    %1242 = vmatprep.subr.bf16.mxu0 0
    %1243 = vmatpush1.bf16.msra.mxu0 0
    %1244 = vmatprep.subr.bf16.mxu0 0
    %1245 = vmatpush1.bf16.msra.mxu0 0
    %1246 = vmatprep.subr.bf16.mxu0 0
    %1247 = vmatpush1.bf16.msra.mxu0 0
    %1248 = vmatprep.subr.bf16.mxu0 0
    %1249 = vmatpush1.bf16.msra.mxu0 0
    %1250 = vmatprep.subr.bf16.mxu0 0
    %1251 = vmatpush1.bf16.msra.mxu0 0
    %1252 = vmatprep.mubr.bf16.mxu0 0
    %1253 = vmatmul.mubr.bf16.gmra.mrb[0].mxu0 %v1218
    %v1254 = vpop.f32.mrb[0].mxu0
    %v1255 = vadd.f32 0.0, %v1254
    %v1256 = vpop.f32.mrb[0].mxu0
    %v1257 = vpop.f32.mrb[0].mxu0
    %v1258 = vadd.f32 0.0, %v1257
    %v1259 = vpop.f32.mrb[0].mxu0
    %1260 = vdwg.mxu0
    %1261 = vrot.lane.b32.xlu0 %v587, 64
    %v1262 = vpop.permute.xlu0 %1261
    %v1265 = vsel %vm683, %v1213, 0
    %1267 = vmatprep.subr.bf16.mxu0 0
    %1268 = vmatpush1.bf16.msra.mxu0 %v1262
    %1269 = vmatprep.subr.bf16.mxu0 0
    %1270 = vmatpush1.bf16.msra.mxu0 0
    %1271 = vmatprep.subr.bf16.mxu0 0
    %1272 = vmatpush1.bf16.msra.mxu0 0
    %1273 = vmatprep.subr.bf16.mxu0 0
    %1274 = vmatpush1.bf16.msra.mxu0 0
    %1275 = vmatprep.subr.bf16.mxu0 0
    %1276 = vmatpush1.bf16.msra.mxu0 0
    %1277 = vmatprep.subr.bf16.mxu0 0
    %1278 = vmatpush1.bf16.msra.mxu0 0
    %1279 = vmatprep.subr.bf16.mxu0 0
    %1280 = vmatpush1.bf16.msra.mxu0 0
    %1281 = vmatprep.subr.bf16.mxu0 0
    %1282 = vmatpush1.bf16.msra.mxu0 0
    %1283 = vmatprep.subr.bf16.mxu0 0
    %1284 = vmatpush1.bf16.msra.mxu0 0
    %1285 = vmatprep.subr.bf16.mxu0 0
    %1286 = vmatpush1.bf16.msra.mxu0 0
    %1287 = vmatprep.subr.bf16.mxu0 0
    %1288 = vmatpush1.bf16.msra.mxu0 0
    %1289 = vmatprep.subr.bf16.mxu0 0
    %1290 = vmatpush1.bf16.msra.mxu0 0
    %1291 = vmatprep.subr.bf16.mxu0 0
    %1292 = vmatpush1.bf16.msra.mxu0 0
    %1293 = vmatprep.subr.bf16.mxu0 0
    %1294 = vmatpush1.bf16.msra.mxu0 0
    %1295 = vmatprep.subr.bf16.mxu0 0
    %1296 = vmatpush1.bf16.msra.mxu0 0
    %1297 = vmatprep.subr.bf16.mxu0 0
    %1298 = vmatpush1.bf16.msra.mxu0 0
    %1299 = vmatprep.mubr.bf16.mxu0 0
    %1300 = vmatmul.mubr.bf16.gmra.mrb[0].mxu0 %v1265
    %v1301 = vpop.f32.mrb[0].mxu0
    %v1302 = vadd.f32 0.0, %v1301
    %v1303 = vpop.f32.mrb[0].mxu0
    %v1304 = vpop.f32.mrb[0].mxu0
    %v1305 = vadd.f32 0.0, %v1304
    %v1306 = vpop.f32.mrb[0].mxu0
    %1307 = vdwg.mxu0
    %1308 = vrot.lane.b32.xlu0 %v582, 32
    %v1309 = vpop.permute.xlu0 %1308
    %1310 = vrot.lane.b32.xlu0 %v584, 32
    %v1311 = vpop.permute.xlu0 %1310
    %v1313 = vsel %vm588, %v1309, 0
    %v1316 = vsel %vm588, %v1311, 0
    %1318 = vmatprep.subr.bf16.mxu0 0
    %1319 = vmatpush1.bf16.xpose.msra.mxu0 %v1316
    %1320 = vmatprep.subr.bf16.mxu0 0
    %1321 = vmatpush1.bf16.xpose.msra.mxu0 0
    %1322 = vmatprep.subr.bf16.mxu0 0
    %1323 = vmatpush1.bf16.xpose.msra.mxu0 0
    %1324 = vmatprep.subr.bf16.mxu0 0
    %1325 = vmatpush1.bf16.xpose.msra.mxu0 0
    %1326 = vmatprep.subr.bf16.mxu0 0
    %1327 = vmatpush1.bf16.xpose.msra.mxu0 0
    %1328 = vmatprep.subr.bf16.mxu0 0
    %1329 = vmatpush1.bf16.xpose.msra.mxu0 0
    %1330 = vmatprep.subr.bf16.mxu0 0
    %1331 = vmatpush1.bf16.xpose.msra.mxu0 0
    %1332 = vmatprep.subr.bf16.mxu0 0
    %1333 = vmatpush1.bf16.xpose.msra.mxu0 0
    %1334 = vmatprep.subr.bf16.mxu0 0
    %1335 = vmatpush1.bf16.xpose.msra.mxu0 0
    %1336 = vmatprep.subr.bf16.mxu0 0
    %1337 = vmatpush1.bf16.xpose.msra.mxu0 0
    %1338 = vmatprep.subr.bf16.mxu0 0
    %1339 = vmatpush1.bf16.xpose.msra.mxu0 0
    %1340 = vmatprep.subr.bf16.mxu0 0
    %1341 = vmatpush1.bf16.xpose.msra.mxu0 0
    %1342 = vmatprep.subr.bf16.mxu0 0
    %1343 = vmatpush1.bf16.xpose.msra.mxu0 0
    %1344 = vmatprep.subr.bf16.mxu0 0
    %1345 = vmatpush1.bf16.xpose.msra.mxu0 0
    %1346 = vmatprep.subr.bf16.mxu0 0
    %1347 = vmatpush1.bf16.xpose.msra.mxu0 0
    %1348 = vmatprep.subr.bf16.mxu0 0
    %1349 = vmatpush1.bf16.xpose.msra.mxu0 0
    %1350 = vmatprep.mubr.bf16.mxu0 0
    %1351 = vmatmul.mubr.bf16.gmra.mrb[0].mxu0 %v1313
    %v1352 = vpop.f32.mrb[0].mxu0
    %v1353 = vadd.f32 0.0, %v1352
    %v1354 = vpop.f32.mrb[0].mxu0
    %v1355 = vpop.f32.mrb[0].mxu0
    %v1356 = vadd.f32 0.0, %v1355
    %v1357 = vpop.f32.mrb[0].mxu0
    %1358 = vdwg.mxu0
    %1359 = vrot.lane.b32.xlu0 %v583, 32
    %v1360 = vpop.permute.xlu0 %1359
    %1361 = vrot.lane.b32.xlu0 %v585, 32
    %v1362 = vpop.permute.xlu0 %1361
    %v1364 = vsel %vm588, %v1360, 0
    %v1367 = vsel %vm588, %v1362, 0
    %1369 = vmatprep.subr.bf16.mxu0 0
    %1370 = vmatpush1.bf16.xpose.msra.mxu0 %v1367
    %1371 = vmatprep.subr.bf16.mxu0 0
    %1372 = vmatpush1.bf16.xpose.msra.mxu0 0
    %1373 = vmatprep.subr.bf16.mxu0 0
    %1374 = vmatpush1.bf16.xpose.msra.mxu0 0
    %1375 = vmatprep.subr.bf16.mxu0 0
    %1376 = vmatpush1.bf16.xpose.msra.mxu0 0
    %1377 = vmatprep.subr.bf16.mxu0 0
    %1378 = vmatpush1.bf16.xpose.msra.mxu0 0
    %1379 = vmatprep.subr.bf16.mxu0 0
    %1380 = vmatpush1.bf16.xpose.msra.mxu0 0
    %1381 = vmatprep.subr.bf16.mxu0 0
    %1382 = vmatpush1.bf16.xpose.msra.mxu0 0
    %1383 = vmatprep.subr.bf16.mxu0 0
    %1384 = vmatpush1.bf16.xpose.msra.mxu0 0
    %1385 = vmatprep.subr.bf16.mxu0 0
    %1386 = vmatpush1.bf16.xpose.msra.mxu0 0
    %1387 = vmatprep.subr.bf16.mxu0 0
    %1388 = vmatpush1.bf16.xpose.msra.mxu0 0
    %1389 = vmatprep.subr.bf16.mxu0 0
    %1390 = vmatpush1.bf16.xpose.msra.mxu0 0
    %1391 = vmatprep.subr.bf16.mxu0 0
    %1392 = vmatpush1.bf16.xpose.msra.mxu0 0
    %1393 = vmatprep.subr.bf16.mxu0 0
    %1394 = vmatpush1.bf16.xpose.msra.mxu0 0
    %1395 = vmatprep.subr.bf16.mxu0 0
    %1396 = vmatpush1.bf16.xpose.msra.mxu0 0
    %1397 = vmatprep.subr.bf16.mxu0 0
    %1398 = vmatpush1.bf16.xpose.msra.mxu0 0
    %1399 = vmatprep.subr.bf16.mxu0 0
    %1400 = vmatpush1.bf16.xpose.msra.mxu0 0
    %1401 = vmatprep.mubr.bf16.mxu0 0
    %1402 = vmatmul.mubr.bf16.gmra.mrb[0].mxu0 %v1364
    %v1403 = vpop.f32.mrb[0].mxu0
    %v1404 = vadd.f32 0.0, %v1403
    %v1405 = vpop.f32.mrb[0].mxu0
    %v1406 = vpop.f32.mrb[0].mxu0
    %v1407 = vadd.f32 0.0, %v1406
    %v1408 = vpop.f32.mrb[0].mxu0
    %1409 = vdwg.mxu0
    %v1410 = vsel %vm683, %v1353, -inf
    %1411 = vmax.xlane.f32.xlu0 %v1410
    %v1412 = vpop.xlane.xlu0 %1411
    %v1413 = vsel %vm683, %v1356, -inf
    %1414 = vmax.xlane.f32.xlu0 %v1413
    %v1415 = vpop.xlane.xlu0 %1414
    %v1416 = vsel %vm683, %v1404, -inf
    %1417 = vmax.xlane.f32.xlu0 %v1416
    %v1418 = vpop.xlane.xlu0 %1417
    %v1419 = vsel %vm683, %v1407, -inf
    %1420 = vmax.xlane.f32.xlu0 %v1419
    %v1421 = vpop.xlane.xlu0 %1420
    %v1422 = vsub.f32 %v1353, %v1412
    %v1423 = vsub.f32 %v1356, %v1415
    %v1424 = vsub.f32 %v1404, %v1418
    %v1425 = vsub.f32 %v1407, %v1421
    %v1426 = vmul.f32 %v1422, 1.442695
    %v1427 = vpow.pop %v1426
    %v1428 = vmul.f32 %v1423, 1.442695
    %v1429 = vpow.pop %v1428
    %v1430 = vmul.f32 %v1424, 1.442695
    %v1431 = vpow.pop %v1430
    %v1432 = vmul.f32 %v1425, 1.442695
    %v1433 = vpow.pop %v1432
    %v1434 = vsel %vm683, %v1427, 0.0
    %1435 = vadd.xlane.f32.xlu0 %v1434
    %v1436 = vpop.xlane.xlu0 %1435
    %v1437 = vsel %vm683, %v1429, 0.0
    %1438 = vadd.xlane.f32.xlu0 %v1437
    %v1439 = vpop.xlane.xlu0 %1438
    %v1440 = vsel %vm683, %v1431, 0.0
    %1441 = vadd.xlane.f32.xlu0 %v1440
    %v1442 = vpop.xlane.xlu0 %1441
    %v1443 = vsel %vm683, %v1433, 0.0
    %1444 = vadd.xlane.f32.xlu0 %v1443
    %v1445 = vpop.xlane.xlu0 %1444
    %v1446 = vrcp.pop %v1436
    %v1447 = vrcp.pop %v1439
    %v1448 = vrcp.pop %v1442
    %v1449 = vrcp.pop %v1445
    %v1450 = vmul.f32 %v1427, %v1446
    %v1451 = vmul.f32 %v1429, %v1447
    %v1452 = vmul.f32 %v1431, %v1448
    %v1453 = vmul.f32 %v1433, %v1449
    %v1454 = vpack.c.bf16 %v1451, %v1450
    %v1455 = vpack.c.bf16 %v1453, %v1452
    %1456 = vrot.lane.b32.xlu0 %v586, 32
    %v1457 = vpop.permute.xlu0 %1456
    %v1460 = vsel %vm683, %v1454, 0
    %1462 = vmatprep.subr.bf16.mxu0 0
    %1463 = vmatpush1.bf16.msra.mxu0 %v1457
    %1464 = vmatprep.subr.bf16.mxu0 0
    %1465 = vmatpush1.bf16.msra.mxu0 0
    %1466 = vmatprep.subr.bf16.mxu0 0
    %1467 = vmatpush1.bf16.msra.mxu0 0
    %1468 = vmatprep.subr.bf16.mxu0 0
    %1469 = vmatpush1.bf16.msra.mxu0 0
    %1470 = vmatprep.subr.bf16.mxu0 0
    %1471 = vmatpush1.bf16.msra.mxu0 0
    %1472 = vmatprep.subr.bf16.mxu0 0
    %1473 = vmatpush1.bf16.msra.mxu0 0
    %1474 = vmatprep.subr.bf16.mxu0 0
    %1475 = vmatpush1.bf16.msra.mxu0 0
    %1476 = vmatprep.subr.bf16.mxu0 0
    %1477 = vmatpush1.bf16.msra.mxu0 0
    %1478 = vmatprep.subr.bf16.mxu0 0
    %1479 = vmatpush1.bf16.msra.mxu0 0
    %1480 = vmatprep.subr.bf16.mxu0 0
    %1481 = vmatpush1.bf16.msra.mxu0 0
    %1482 = vmatprep.subr.bf16.mxu0 0
    %1483 = vmatpush1.bf16.msra.mxu0 0
    %1484 = vmatprep.subr.bf16.mxu0 0
    %1485 = vmatpush1.bf16.msra.mxu0 0
    %1486 = vmatprep.subr.bf16.mxu0 0
    %1487 = vmatpush1.bf16.msra.mxu0 0
    %1488 = vmatprep.subr.bf16.mxu0 0
    %1489 = vmatpush1.bf16.msra.mxu0 0
    %1490 = vmatprep.subr.bf16.mxu0 0
    %1491 = vmatpush1.bf16.msra.mxu0 0
    %1492 = vmatprep.subr.bf16.mxu0 0
    %1493 = vmatpush1.bf16.msra.mxu0 0
    %1494 = vmatprep.mubr.bf16.mxu0 0
    %1495 = vmatmul.mubr.bf16.gmra.mrb[0].mxu0 %v1460
    %v1496 = vpop.f32.mrb[0].mxu0
    %v1497 = vadd.f32 0.0, %v1496
    %v1498 = vpop.f32.mrb[0].mxu0
    %v1499 = vpop.f32.mrb[0].mxu0
    %v1500 = vadd.f32 0.0, %v1499
    %v1501 = vpop.f32.mrb[0].mxu0
    %1502 = vdwg.mxu0
    %1503 = vrot.lane.b32.xlu0 %v587, 32
    %v1504 = vpop.permute.xlu0 %1503
    %v1507 = vsel %vm683, %v1455, 0
    %1509 = vmatprep.subr.bf16.mxu0 0
    %1510 = vmatpush1.bf16.msra.mxu0 %v1504
    %1511 = vmatprep.subr.bf16.mxu0 0
    %1512 = vmatpush1.bf16.msra.mxu0 0
    %1513 = vmatprep.subr.bf16.mxu0 0
    %1514 = vmatpush1.bf16.msra.mxu0 0
    %1515 = vmatprep.subr.bf16.mxu0 0
    %1516 = vmatpush1.bf16.msra.mxu0 0
    %1517 = vmatprep.subr.bf16.mxu0 0
    %1518 = vmatpush1.bf16.msra.mxu0 0
    %1519 = vmatprep.subr.bf16.mxu0 0
    %1520 = vmatpush1.bf16.msra.mxu0 0
    %1521 = vmatprep.subr.bf16.mxu0 0
    %1522 = vmatpush1.bf16.msra.mxu0 0
    %1523 = vmatprep.subr.bf16.mxu0 0
    %1524 = vmatpush1.bf16.msra.mxu0 0
    %1525 = vmatprep.subr.bf16.mxu0 0
    %1526 = vmatpush1.bf16.msra.mxu0 0
    %1527 = vmatprep.subr.bf16.mxu0 0
    %1528 = vmatpush1.bf16.msra.mxu0 0
    %1529 = vmatprep.subr.bf16.mxu0 0
    %1530 = vmatpush1.bf16.msra.mxu0 0
    %1531 = vmatprep.subr.bf16.mxu0 0
    %1532 = vmatpush1.bf16.msra.mxu0 0
    %1533 = vmatprep.subr.bf16.mxu0 0
    %1534 = vmatpush1.bf16.msra.mxu0 0
    %1535 = vmatprep.subr.bf16.mxu0 0
    %1536 = vmatpush1.bf16.msra.mxu0 0
    %1537 = vmatprep.subr.bf16.mxu0 0
    %1538 = vmatpush1.bf16.msra.mxu0 0
    %1539 = vmatprep.subr.bf16.mxu0 0
    %1540 = vmatpush1.bf16.msra.mxu0 0
    %1541 = vmatprep.mubr.bf16.mxu0 0
    %1542 = vmatmul.mubr.bf16.gmra.mrb[0].mxu0 %v1507
    %v1543 = vpop.f32.mrb[0].mxu0
    %v1544 = vadd.f32 0.0, %v1543
    %v1545 = vpop.f32.mrb[0].mxu0
    %v1546 = vpop.f32.mrb[0].mxu0
    %v1547 = vadd.f32 0.0, %v1546
    %v1548 = vpop.f32.mrb[0].mxu0
    %1549 = vdwg.mxu0
    %1554 = vrot.lane.b32.xlu0 %v1012, 32
    %v1555 = vpop.permute.xlu0 %1554
    %1556 = vrot.lane.b32.xlu0 %v1015, 32
    %v1557 = vpop.permute.xlu0 %1556
    %1558 = vrot.lane.b32.xlu0 %v1060, 32
    %v1559 = vpop.permute.xlu0 %1558
    %1560 = vrot.lane.b32.xlu0 %v1063, 32
    %v1561 = vpop.permute.xlu0 %1560
    %1570 = vrot.lane.b32.xlu0 %v1255, 64
    %v1571 = vpop.permute.xlu0 %1570
    %1572 = vrot.lane.b32.xlu0 %v1258, 64
    %v1573 = vpop.permute.xlu0 %1572
    %1574 = vrot.lane.b32.xlu0 %v1302, 64
    %v1575 = vpop.permute.xlu0 %1574
    %1576 = vrot.lane.b32.xlu0 %v1305, 64
    %v1577 = vpop.permute.xlu0 %1576
    %1586 = vrot.lane.b32.xlu0 %v1497, 96
    %v1587 = vpop.permute.xlu0 %1586
    %1588 = vrot.lane.b32.xlu0 %v1500, 96
    %v1589 = vpop.permute.xlu0 %1588
    %1590 = vrot.lane.b32.xlu0 %v1544, 96
    %v1591 = vpop.permute.xlu0 %1590
    %1592 = vrot.lane.b32.xlu0 %v1547, 96
    %v1593 = vpop.permute.xlu0 %1592
    %v1598 = vsel %vm588, %v768, %v1555
    %v1599 = vsel %vm588, %v771, %v1557
    %v1600 = vsel %vm588, %v812, %v1559
    %v1601 = vsel %vm588, %v815, %v1561
    %vm1602 = vcmask 523264
    %v1603 = vsel %vm1602, %v1598, %v1571
    %v1604 = vsel %vm1602, %v1599, %v1573
    %v1605 = vsel %vm1602, %v1600, %v1575
    %v1606 = vsel %vm1602, %v1601, %v1577
    %vm1607 = vcmask 785408
    %v1608 = vsel %vm1607, %v1603, %v1587
    %v1609 = vsel %vm1607, %v1604, %v1589
    %v1610 = vsel %vm1607, %v1605, %v1591
    %v1611 = vsel %vm1607, %v1606, %v1593
    %v1612 = vpack.c.bf16 %v1609, %v1608
    %v1613 = vpack.c.bf16 %v1611, %v1610
    %v1614 = vld [vmem:[#allocation10] sm:$0xf]
    %v1615 = vld [vmem:[#allocation10 + $0x4] sm:$0xf]
    %v1616 = vld [vmem:[#allocation10 + $0x8] sm:$0xf]
    %v1617 = vld [vmem:[#allocation10 + $0xc] sm:$0xf]
    %v1618 = vld [vmem:[#allocation10 + $0x10] sm:$0xf]
    %v1619 = vld [vmem:[#allocation10 + $0x14] sm:$0xf]
    %v1620 = vld [vmem:[#allocation10 + $0x18] sm:$0xf]
    %v1621 = vld [vmem:[#allocation10 + $0x1c] sm:$0xf]
    %v1622 = vld [vmem:[#allocation10 + $0x20] sm:$0xf]
    %v1623 = vld [vmem:[#allocation10 + $0x24] sm:$0xf]
    %v1624 = vld [vmem:[#allocation10 + $0x28] sm:$0xf]
    %v1625 = vld [vmem:[#allocation10 + $0x2c] sm:$0xf]
    %v1626 = vld [vmem:[#allocation10 + $0x30] sm:$0xf]
    %v1627 = vld [vmem:[#allocation10 + $0x34] sm:$0xf]
    %v1628 = vld [vmem:[#allocation10 + $0x38] sm:$0xf]
    %v1629 = vld [vmem:[#allocation10 + $0x3c] sm:$0xf]
    %v1630 = vld [vmem:[%s7] sm:$0x1]
    %v1632 = vlaneseq
    %v1633 = vshrl.u32 %v1632, 7
    %v1634 = vsub.s32 0, %v1633
    %v1635 = vrot.slane %v1630, %v1634
    %v1653 = vunpack.c.l.b16 %v1614
    %v1654 = vunpack.c.l.b16 %v1615
    %v1655 = vunpack.c.l.b16 %v1616
    %v1656 = vunpack.c.l.b16 %v1617
    %v1657 = vunpack.c.l.b16 %v1618
    %v1658 = vunpack.c.l.b16 %v1619
    %v1659 = vunpack.c.l.b16 %v1620
    %v1660 = vunpack.c.l.b16 %v1621
    %v1661 = vunpack.c.l.b16 %v1622
    %v1662 = vunpack.c.l.b16 %v1623
    %v1663 = vunpack.c.l.b16 %v1624
    %v1664 = vunpack.c.l.b16 %v1625
    %v1665 = vunpack.c.l.b16 %v1626
    %v1666 = vunpack.c.l.b16 %v1627
    %v1667 = vunpack.c.l.b16 %v1628
    %v1668 = vunpack.c.l.b16 %v1629
    %v1669 = vpack.c.b16 %v1654, %v1653
    %v1670 = vpack.c.b16 %v1656, %v1655
    %v1671 = vpack.c.b16 %v1658, %v1657
    %v1672 = vpack.c.b16 %v1660, %v1659
    %v1673 = vpack.c.b16 %v1662, %v1661
    %v1674 = vpack.c.b16 %v1664, %v1663
    %v1675 = vpack.c.b16 %v1666, %v1665
    %v1676 = vpack.c.b16 %v1668, %v1667
    %1685 = vmatprep.subr.bf16.mxu0 0
    %1686 = vmatpush1.bf16.msra.mxu0 %v1669
    %1687 = vmatprep.subr.bf16.mxu0 0
    %1688 = vmatpush1.bf16.msra.mxu0 %v1670
    %1689 = vmatprep.subr.bf16.mxu0 0
    %1690 = vmatpush1.bf16.msra.mxu0 %v1671
    %1691 = vmatprep.subr.bf16.mxu0 0
    %1692 = vmatpush1.bf16.msra.mxu0 %v1672
    %1693 = vmatprep.subr.bf16.mxu0 0
    %1694 = vmatpush1.bf16.msra.mxu0 %v1673
    %1695 = vmatprep.subr.bf16.mxu0 0
    %1696 = vmatpush1.bf16.msra.mxu0 %v1674
    %1697 = vmatprep.subr.bf16.mxu0 0
    %1698 = vmatpush1.bf16.msra.mxu0 %v1675
    %1699 = vmatprep.subr.bf16.mxu0 0
    %1700 = vmatpush1.bf16.msra.mxu0 %v1676
    %1701 = vmatprep.subr.bf16.mxu0 0
    %1702 = vmatpush1.bf16.msra.mxu0 0
    %1703 = vmatprep.subr.bf16.mxu0 0
    %1704 = vmatpush1.bf16.msra.mxu0 0
    %1705 = vmatprep.subr.bf16.mxu0 0
    %1706 = vmatpush1.bf16.msra.mxu0 0
    %1707 = vmatprep.subr.bf16.mxu0 0
    %1708 = vmatpush1.bf16.msra.mxu0 0
    %1709 = vmatprep.subr.bf16.mxu0 0
    %1710 = vmatpush1.bf16.msra.mxu0 0
    %1711 = vmatprep.subr.bf16.mxu0 0
    %1712 = vmatpush1.bf16.msra.mxu0 0
    %1713 = vmatprep.subr.bf16.mxu0 0
    %1714 = vmatpush1.bf16.msra.mxu0 0
    %1715 = vmatprep.subr.bf16.mxu0 0
    %1716 = vmatpush1.bf16.msra.mxu0 0
    %1717 = vmatprep.mubr.bf16.mxu0 0
    %1718 = vmatmul.mubr.bf16.gmra.mrb[0].mxu0 %v1612
    %v1719 = vpop.f32.mrb[0].mxu0
    %v1720 = vadd.f32 %v1635, %v1719
    %v1721 = vpop.f32.mrb[0].mxu0
    %v1722 = vpop.f32.mrb[0].mxu0
    %v1723 = vadd.f32 %v1635, %v1722
    %v1724 = vpop.f32.mrb[0].mxu0
    %1725 = vmatprep.mubr.bf16.mxu0 0
    %1726 = vmatmul.mubr.bf16.gmra.mrb[0].mxu0 %v1613
    %v1727 = vpop.f32.mrb[0].mxu0
    %v1728 = vadd.f32 %v1635, %v1727
    %v1729 = vpop.f32.mrb[0].mxu0
    %v1730 = vpop.f32.mrb[0].mxu0
    %v1731 = vadd.f32 %v1635, %v1730
    %v1732 = vpop.f32.mrb[0].mxu0
    %1733 = vdwg.mxu0
    %v1734 = vadd.f32 %v170, %v1720
    %v1735 = vadd.f32 %v171, %v1723
    %v1736 = vadd.f32 %v172, %v1728
    %v1737 = vadd.f32 %v173, %v1731
    %v1738 = vld [vmem:[%s8] sm:$0x1]
    %v1739 = vld [vmem:[%s9] sm:$0x1]
    %1740 = vadd.xlane.f32.xlu0 %v1734
    %v1741 = vpop.xlane.xlu0 %1740
    %1742 = vadd.xlane.f32.xlu0 %v1735
    %v1743 = vpop.xlane.xlu0 %1742
    %1744 = vadd.xlane.f32.xlu0 %v1736
    %v1745 = vpop.xlane.xlu0 %1744
    %1746 = vadd.xlane.f32.xlu0 %v1737
    %v1747 = vpop.xlane.xlu0 %1746
    %v1748 = vmul.f32 %v1741, %v184
    %v1749 = vmul.f32 %v1743, %v184
    %v1750 = vmul.f32 %v1745, %v184
    %v1751 = vmul.f32 %v1747, %v184
    %v1752 = vsub.f32 %v1734, %v1748
    %v1753 = vsub.f32 %v1735, %v1749
    %v1754 = vsub.f32 %v1736, %v1750
    %v1755 = vsub.f32 %v1737, %v1751
    %v1756 = vmul.f32 %v1752, %v1752
    %v1757 = vmul.f32 %v1753, %v1753
    %v1758 = vmul.f32 %v1754, %v1754
    %v1759 = vmul.f32 %v1755, %v1755
    %1760 = vadd.xlane.f32.xlu0 %v1756
    %v1761 = vpop.xlane.xlu0 %1760
    %1762 = vadd.xlane.f32.xlu0 %v1757
    %v1763 = vpop.xlane.xlu0 %1762
    %1764 = vadd.xlane.f32.xlu0 %v1758
    %v1765 = vpop.xlane.xlu0 %1764
    %1766 = vadd.xlane.f32.xlu0 %v1759
    %v1767 = vpop.xlane.xlu0 %1766
    %v1768 = vmul.f32 %v1761, %v184
    %v1769 = vmul.f32 %v1763, %v184
    %v1770 = vmul.f32 %v1765, %v184
    %v1771 = vmul.f32 %v1767, %v184
    %v1772 = vadd.f32 %v1768, 1e-05
    %v1773 = vadd.f32 %v1769, 1e-05
    %v1774 = vadd.f32 %v1770, 1e-05
    %v1775 = vadd.f32 %v1771, 1e-05
    %v1776 = vrsqrt.pop %v1772
    %v1777 = vrsqrt.pop %v1773
    %v1778 = vrsqrt.pop %v1774
    %v1779 = vrsqrt.pop %v1775
    %v1780 = vmul.f32 %v1752, %v1776
    %v1781 = vmul.f32 %v1753, %v1777
    %v1782 = vmul.f32 %v1754, %v1778
    %v1783 = vmul.f32 %v1755, %v1779
    %v1785 = vlaneseq
    %v1786 = vshrl.u32 %v1785, 7
    %v1787 = vsub.s32 0, %v1786
    %v1788 = vrot.slane %v1738, %v1787
    %v1790 = vmul.f32 %v1780, %v1788
    %v1791 = vmul.f32 %v1781, %v1788
    %v1792 = vmul.f32 %v1782, %v1788
    %v1793 = vmul.f32 %v1783, %v1788
    %v1795 = vlaneseq
    %v1796 = vshrl.u32 %v1795, 7
    %v1797 = vsub.s32 0, %v1796
    %v1798 = vrot.slane %v1739, %v1797
    %v1800 = vadd.f32 %v1790, %v1798
    %v1801 = vadd.f32 %v1791, %v1798
    %v1802 = vadd.f32 %v1792, %v1798
    %v1803 = vadd.f32 %v1793, %v1798
    %v1804 = vpack.c.bf16 %v1801, %v1800
    %v1805 = vpack.c.bf16 %v1803, %v1802
    %v1806 = vld [vmem:[#allocation11] sm:$0xff]
    %v1807 = vld [vmem:[#allocation11 + $0x8] sm:$0xff]
    %v1808 = vld [vmem:[#allocation11 + $0x10] sm:$0xff]
    %v1809 = vld [vmem:[#allocation11 + $0x18] sm:$0xff]
    %v1810 = vld [vmem:[#allocation11 + $0x20] sm:$0xff]
    %v1811 = vld [vmem:[#allocation11 + $0x28] sm:$0xff]
    %v1812 = vld [vmem:[#allocation11 + $0x30] sm:$0xff]
    %v1813 = vld [vmem:[#allocation11 + $0x38] sm:$0xff]
    %v1814 = vld [vmem:[#allocation11 + $0x40] sm:$0xff]
    %v1815 = vld [vmem:[#allocation11 + $0x48] sm:$0xff]
    %v1816 = vld [vmem:[#allocation11 + $0x50] sm:$0xff]
    %v1817 = vld [vmem:[#allocation11 + $0x58] sm:$0xff]
    %v1818 = vld [vmem:[#allocation11 + $0x60] sm:$0xff]
    %v1819 = vld [vmem:[#allocation11 + $0x68] sm:$0xff]
    %v1820 = vld [vmem:[#allocation11 + $0x70] sm:$0xff]
    %v1821 = vld [vmem:[#allocation11 + $0x78] sm:$0xff]
    %v1822 = vld [vmem:[%s11] sm:$0x3]
    %v1824 = vlaneseq
    %v1825 = vshrl.u32 %v1824, 7
    %v1826 = vsub.s32 0, %v1825
    %v1827 = vrot.slane %v1822, %v1826
    %v1828 = vlaneseq
    %v1829 = vshrl.u32 %v1828, 7
    %v1830 = vsub.s32 1, %v1829
    %v1831 = vrot.slane %v1822, %v1830
    %v1850 = vunpack.c.l.b16 %v1806
    %v1851 = vunpack.c.h.b16 %v1806
    %v1852 = vunpack.c.l.b16 %v1807
    %v1853 = vunpack.c.h.b16 %v1807
    %v1854 = vunpack.c.l.b16 %v1808
    %v1855 = vunpack.c.h.b16 %v1808
    %v1856 = vunpack.c.l.b16 %v1809
    %v1857 = vunpack.c.h.b16 %v1809
    %v1858 = vunpack.c.l.b16 %v1810
    %v1859 = vunpack.c.h.b16 %v1810
    %v1860 = vunpack.c.l.b16 %v1811
    %v1861 = vunpack.c.h.b16 %v1811
    %v1862 = vunpack.c.l.b16 %v1812
    %v1863 = vunpack.c.h.b16 %v1812
    %v1864 = vunpack.c.l.b16 %v1813
    %v1865 = vunpack.c.h.b16 %v1813
    %v1866 = vunpack.c.l.b16 %v1814
    %v1867 = vunpack.c.h.b16 %v1814
    %v1868 = vunpack.c.l.b16 %v1815
    %v1869 = vunpack.c.h.b16 %v1815
    %v1870 = vunpack.c.l.b16 %v1816
    %v1871 = vunpack.c.h.b16 %v1816
    %v1872 = vunpack.c.l.b16 %v1817
    %v1873 = vunpack.c.h.b16 %v1817
    %v1874 = vunpack.c.l.b16 %v1818
    %v1875 = vunpack.c.h.b16 %v1818
    %v1876 = vunpack.c.l.b16 %v1819
    %v1877 = vunpack.c.h.b16 %v1819
    %v1878 = vunpack.c.l.b16 %v1820
    %v1879 = vunpack.c.h.b16 %v1820
    %v1880 = vunpack.c.l.b16 %v1821
    %v1881 = vunpack.c.h.b16 %v1821
    %v1882 = vpack.c.b16 %v1852, %v1850
    %v1883 = vpack.c.b16 %v1853, %v1851
    %v1884 = vpack.c.b16 %v1856, %v1854
    %v1885 = vpack.c.b16 %v1857, %v1855
    %v1886 = vpack.c.b16 %v1860, %v1858
    %v1887 = vpack.c.b16 %v1861, %v1859
    %v1888 = vpack.c.b16 %v1864, %v1862
    %v1889 = vpack.c.b16 %v1865, %v1863
    %v1890 = vpack.c.b16 %v1868, %v1866
    %v1891 = vpack.c.b16 %v1869, %v1867
    %v1892 = vpack.c.b16 %v1872, %v1870
    %v1893 = vpack.c.b16 %v1873, %v1871
    %v1894 = vpack.c.b16 %v1876, %v1874
    %v1895 = vpack.c.b16 %v1877, %v1875
    %v1896 = vpack.c.b16 %v1880, %v1878
    %v1897 = vpack.c.b16 %v1881, %v1879
    %1914 = vmatprep.subr.bf16.mxu0 %v1883
    %1915 = vmatpush1.bf16.msra.mxu0 %v1882
    %1916 = vmatprep.subr.bf16.mxu0 %v1885
    %1917 = vmatpush1.bf16.msra.mxu0 %v1884
    %1918 = vmatprep.subr.bf16.mxu0 %v1887
    %1919 = vmatpush1.bf16.msra.mxu0 %v1886
    %1920 = vmatprep.subr.bf16.mxu0 %v1889
    %1921 = vmatpush1.bf16.msra.mxu0 %v1888
    %1922 = vmatprep.subr.bf16.mxu0 %v1891
    %1923 = vmatpush1.bf16.msra.mxu0 %v1890
    %1924 = vmatprep.subr.bf16.mxu0 %v1893
    %1925 = vmatpush1.bf16.msra.mxu0 %v1892
    %1926 = vmatprep.subr.bf16.mxu0 %v1895
    %1927 = vmatpush1.bf16.msra.mxu0 %v1894
    %1928 = vmatprep.subr.bf16.mxu0 %v1897
    %1929 = vmatpush1.bf16.msra.mxu0 %v1896
    %1930 = vmatprep.subr.bf16.mxu0 0
    %1931 = vmatpush1.bf16.msra.mxu0 0
    %1932 = vmatprep.subr.bf16.mxu0 0
    %1933 = vmatpush1.bf16.msra.mxu0 0
    %1934 = vmatprep.subr.bf16.mxu0 0
    %1935 = vmatpush1.bf16.msra.mxu0 0
    %1936 = vmatprep.subr.bf16.mxu0 0
    %1937 = vmatpush1.bf16.msra.mxu0 0
    %1938 = vmatprep.subr.bf16.mxu0 0
    %1939 = vmatpush1.bf16.msra.mxu0 0
    %1940 = vmatprep.subr.bf16.mxu0 0
    %1941 = vmatpush1.bf16.msra.mxu0 0
    %1942 = vmatprep.subr.bf16.mxu0 0
    %1943 = vmatpush1.bf16.msra.mxu0 0
    %1944 = vmatprep.subr.bf16.mxu0 0
    %1945 = vmatpush1.bf16.msra.mxu0 0
    %1946 = vmatprep.mubr.bf16.mxu0 0
    %1947 = vmatmul.mubr.bf16.gmra.mrb[0].mxu0 %v1804
    %v1948 = vpop.f32.mrb[0].mxu0
    %v1949 = vadd.f32 %v1827, %v1948
    %v1950 = vpop.f32.mrb[0].mxu0
    %v1951 = vadd.f32 %v1831, %v1950
    %v1952 = vpop.f32.mrb[0].mxu0
    %v1953 = vadd.f32 %v1827, %v1952
    %v1954 = vpop.f32.mrb[0].mxu0
    %v1955 = vadd.f32 %v1831, %v1954
    %1956 = vmatprep.mubr.bf16.mxu0 0
    %1957 = vmatmul.mubr.bf16.gmra.mrb[0].mxu0 %v1805
    %v1958 = vpop.f32.mrb[0].mxu0
    %v1959 = vadd.f32 %v1827, %v1958
    %v1960 = vpop.f32.mrb[0].mxu0
    %v1961 = vadd.f32 %v1831, %v1960
    %v1962 = vpop.f32.mrb[0].mxu0
    %v1963 = vadd.f32 %v1827, %v1962
    %v1964 = vpop.f32.mrb[0].mxu0
    %v1965 = vadd.f32 %v1831, %v1964
    %1966 = vdwg.mxu0
    %v1967 = vmax.f32 %v1949, 0.0
    %v1968 = vmax.f32 %v1951, 0.0
    %v1969 = vmax.f32 %v1953, 0.0
    %v1970 = vmax.f32 %v1955, 0.0
    %v1971 = vmax.f32 %v1959, 0.0
    %v1972 = vmax.f32 %v1961, 0.0
    %v1973 = vmax.f32 %v1963, 0.0
    %v1974 = vmax.f32 %v1965, 0.0
    %v1975 = vpack.c.bf16 %v1969, %v1967
    %v1976 = vpack.c.bf16 %v1970, %v1968
    %v1977 = vpack.c.bf16 %v1973, %v1971
    %v1978 = vpack.c.bf16 %v1974, %v1972
    %v1979 = vld [vmem:[#allocation13] sm:$0xf]
    %v1980 = vld [vmem:[#allocation13 + $0x4] sm:$0xf]
    %v1981 = vld [vmem:[#allocation13 + $0x8] sm:$0xf]
    %v1982 = vld [vmem:[#allocation13 + $0xc] sm:$0xf]
    %v1983 = vld [vmem:[#allocation13 + $0x10] sm:$0xf]
    %v1984 = vld [vmem:[#allocation13 + $0x14] sm:$0xf]
    %v1985 = vld [vmem:[#allocation13 + $0x18] sm:$0xf]
    %v1986 = vld [vmem:[#allocation13 + $0x1c] sm:$0xf]
    %v1987 = vld [vmem:[#allocation13 + $0x20] sm:$0xf]
    %v1988 = vld [vmem:[#allocation13 + $0x24] sm:$0xf]
    %v1989 = vld [vmem:[#allocation13 + $0x28] sm:$0xf]
    %v1990 = vld [vmem:[#allocation13 + $0x2c] sm:$0xf]
    %v1991 = vld [vmem:[#allocation13 + $0x30] sm:$0xf]
    %v1992 = vld [vmem:[#allocation13 + $0x34] sm:$0xf]
    %v1993 = vld [vmem:[#allocation13 + $0x38] sm:$0xf]
    %v1994 = vld [vmem:[#allocation13 + $0x3c] sm:$0xf]
    %v1995 = vld [vmem:[#allocation13 + $0x40] sm:$0xf]
    %v1996 = vld [vmem:[#allocation13 + $0x44] sm:$0xf]
    %v1997 = vld [vmem:[#allocation13 + $0x48] sm:$0xf]
    %v1998 = vld [vmem:[#allocation13 + $0x4c] sm:$0xf]
    %v1999 = vld [vmem:[#allocation13 + $0x50] sm:$0xf]
    %v2000 = vld [vmem:[#allocation13 + $0x54] sm:$0xf]
    %v2001 = vld [vmem:[#allocation13 + $0x58] sm:$0xf]
    %v2002 = vld [vmem:[#allocation13 + $0x5c] sm:$0xf]
    %v2003 = vld [vmem:[#allocation13 + $0x60] sm:$0xf]
    %v2004 = vld [vmem:[#allocation13 + $0x64] sm:$0xf]
    %v2005 = vld [vmem:[#allocation13 + $0x68] sm:$0xf]
    %v2006 = vld [vmem:[#allocation13 + $0x6c] sm:$0xf]
    %v2007 = vld [vmem:[#allocation13 + $0x70] sm:$0xf]
    %v2008 = vld [vmem:[#allocation13 + $0x74] sm:$0xf]
    %v2009 = vld [vmem:[#allocation13 + $0x78] sm:$0xf]
    %v2010 = vld [vmem:[#allocation13 + $0x7c] sm:$0xf]
    %v2011 = vld [vmem:[%s13] sm:$0x1]
    %v2013 = vlaneseq
    %v2014 = vshrl.u32 %v2013, 7
    %v2015 = vsub.s32 0, %v2014
    %v2016 = vrot.slane %v2011, %v2015
    %v2050 = vunpack.c.l.b16 %v1979
    %v2051 = vunpack.c.l.b16 %v1980
    %v2052 = vunpack.c.l.b16 %v1981
    %v2053 = vunpack.c.l.b16 %v1982
    %v2054 = vunpack.c.l.b16 %v1983
    %v2055 = vunpack.c.l.b16 %v1984
    %v2056 = vunpack.c.l.b16 %v1985
    %v2057 = vunpack.c.l.b16 %v1986
    %v2058 = vunpack.c.l.b16 %v1987
    %v2059 = vunpack.c.l.b16 %v1988
    %v2060 = vunpack.c.l.b16 %v1989
    %v2061 = vunpack.c.l.b16 %v1990
    %v2062 = vunpack.c.l.b16 %v1991
    %v2063 = vunpack.c.l.b16 %v1992
    %v2064 = vunpack.c.l.b16 %v1993
    %v2065 = vunpack.c.l.b16 %v1994
    %v2066 = vunpack.c.l.b16 %v1995
    %v2067 = vunpack.c.l.b16 %v1996
    %v2068 = vunpack.c.l.b16 %v1997
    %v2069 = vunpack.c.l.b16 %v1998
    %v2070 = vunpack.c.l.b16 %v1999
    %v2071 = vunpack.c.l.b16 %v2000
    %v2072 = vunpack.c.l.b16 %v2001
    %v2073 = vunpack.c.l.b16 %v2002
    %v2074 = vunpack.c.l.b16 %v2003
    %v2075 = vunpack.c.l.b16 %v2004
    %v2076 = vunpack.c.l.b16 %v2005
    %v2077 = vunpack.c.l.b16 %v2006
    %v2078 = vunpack.c.l.b16 %v2007
    %v2079 = vunpack.c.l.b16 %v2008
    %v2080 = vunpack.c.l.b16 %v2009
    %v2081 = vunpack.c.l.b16 %v2010
    %v2082 = vpack.c.b16 %v2051, %v2050
    %v2083 = vpack.c.b16 %v2053, %v2052
    %v2084 = vpack.c.b16 %v2055, %v2054
    %v2085 = vpack.c.b16 %v2057, %v2056
    %v2086 = vpack.c.b16 %v2059, %v2058
    %v2087 = vpack.c.b16 %v2061, %v2060
    %v2088 = vpack.c.b16 %v2063, %v2062
    %v2089 = vpack.c.b16 %v2065, %v2064
    %v2090 = vpack.c.b16 %v2067, %v2066
    %v2091 = vpack.c.b16 %v2069, %v2068
    %v2092 = vpack.c.b16 %v2071, %v2070
    %v2093 = vpack.c.b16 %v2073, %v2072
    %v2094 = vpack.c.b16 %v2075, %v2074
    %v2095 = vpack.c.b16 %v2077, %v2076
    %v2096 = vpack.c.b16 %v2079, %v2078
    %v2097 = vpack.c.b16 %v2081, %v2080
    %2114 = vmatprep.subr.bf16.mxu0 0
    %2115 = vmatpush1.bf16.msra.mxu0 %v2082
    %2116 = vmatprep.subr.bf16.mxu0 0
    %2117 = vmatpush1.bf16.msra.mxu0 %v2083
    %2118 = vmatprep.subr.bf16.mxu0 0
    %2119 = vmatpush1.bf16.msra.mxu0 %v2084
    %2120 = vmatprep.subr.bf16.mxu0 0
    %2121 = vmatpush1.bf16.msra.mxu0 %v2085
    %2122 = vmatprep.subr.bf16.mxu0 0
    %2123 = vmatpush1.bf16.msra.mxu0 %v2086
    %2124 = vmatprep.subr.bf16.mxu0 0
    %2125 = vmatpush1.bf16.msra.mxu0 %v2087
    %2126 = vmatprep.subr.bf16.mxu0 0
    %2127 = vmatpush1.bf16.msra.mxu0 %v2088
    %2128 = vmatprep.subr.bf16.mxu0 0
    %2129 = vmatpush1.bf16.msra.mxu0 %v2089
    %2130 = vmatprep.subr.bf16.mxu0 0
    %2131 = vmatpush1.bf16.msra.mxu0 %v2090
    %2132 = vmatprep.subr.bf16.mxu0 0
    %2133 = vmatpush1.bf16.msra.mxu0 %v2091
    %2134 = vmatprep.subr.bf16.mxu0 0
    %2135 = vmatpush1.bf16.msra.mxu0 %v2092
    %2136 = vmatprep.subr.bf16.mxu0 0
    %2137 = vmatpush1.bf16.msra.mxu0 %v2093
    %2138 = vmatprep.subr.bf16.mxu0 0
    %2139 = vmatpush1.bf16.msra.mxu0 %v2094
    %2140 = vmatprep.subr.bf16.mxu0 0
    %2141 = vmatpush1.bf16.msra.mxu0 %v2095
    %2142 = vmatprep.subr.bf16.mxu0 0
    %2143 = vmatpush1.bf16.msra.mxu0 %v2096
    %2144 = vmatprep.subr.bf16.mxu0 0
    %2145 = vmatpush1.bf16.msra.mxu0 %v2097
    %2146 = vmatprep.mubr.bf16.mxu0 %v1976
    %2147 = vmatmul.mubr.bf16.gmra.mrb[0].mxu0 %v1975
    %v2148 = vpop.f32.mrb[0].mxu0
    %v2149 = vadd.f32 %v2016, %v2148
    %v2150 = vpop.f32.mrb[0].mxu0
    %v2151 = vpop.f32.mrb[0].mxu0
    %v2152 = vadd.f32 %v2016, %v2151
    %v2153 = vpop.f32.mrb[0].mxu0
    %2154 = vmatprep.mubr.bf16.mxu0 %v1978
    %2155 = vmatmul.mubr.bf16.gmra.mrb[0].mxu0 %v1977
    %v2156 = vpop.f32.mrb[0].mxu0
    %v2157 = vadd.f32 %v2016, %v2156
    %v2158 = vpop.f32.mrb[0].mxu0
    %v2159 = vpop.f32.mrb[0].mxu0
    %v2160 = vadd.f32 %v2016, %v2159
    %v2161 = vpop.f32.mrb[0].mxu0
    %2162 = vdwg.mxu0
    %v2163 = vadd.f32 %v1734, %v2149
    %v2164 = vadd.f32 %v1735, %v2152
    %v2165 = vadd.f32 %v1736, %v2157
    %v2166 = vadd.f32 %v1737, %v2160
    %v2167 = vld [vmem:[%s14] sm:$0x1]
    %v2168 = vld [vmem:[%s15] sm:$0x1]
    %2169 = vadd.xlane.f32.xlu0 %v2163
    %v2170 = vpop.xlane.xlu0 %2169
    %2171 = vadd.xlane.f32.xlu0 %v2164
    %v2172 = vpop.xlane.xlu0 %2171
    %2173 = vadd.xlane.f32.xlu0 %v2165
    %v2174 = vpop.xlane.xlu0 %2173
    %2175 = vadd.xlane.f32.xlu0 %v2166
    %v2176 = vpop.xlane.xlu0 %2175
    %v2177 = vmul.f32 %v2170, %v184
    %v2178 = vmul.f32 %v2172, %v184
    %v2179 = vmul.f32 %v2174, %v184
    %v2180 = vmul.f32 %v2176, %v184
    %v2181 = vsub.f32 %v2163, %v2177
    %v2182 = vsub.f32 %v2164, %v2178
    %v2183 = vsub.f32 %v2165, %v2179
    %v2184 = vsub.f32 %v2166, %v2180
    %v2185 = vmul.f32 %v2181, %v2181
    %v2186 = vmul.f32 %v2182, %v2182
    %v2187 = vmul.f32 %v2183, %v2183
    %v2188 = vmul.f32 %v2184, %v2184
    %2189 = vadd.xlane.f32.xlu0 %v2185
    %v2190 = vpop.xlane.xlu0 %2189
    %2191 = vadd.xlane.f32.xlu0 %v2186
    %v2192 = vpop.xlane.xlu0 %2191
    %2193 = vadd.xlane.f32.xlu0 %v2187
    %v2194 = vpop.xlane.xlu0 %2193
    %2195 = vadd.xlane.f32.xlu0 %v2188
    %v2196 = vpop.xlane.xlu0 %2195
    %v2197 = vmul.f32 %v2190, %v184
    %v2198 = vmul.f32 %v2192, %v184
    %v2199 = vmul.f32 %v2194, %v184
    %v2200 = vmul.f32 %v2196, %v184
    %v2201 = vadd.f32 %v2197, 1e-05
    %v2202 = vadd.f32 %v2198, 1e-05
    %v2203 = vadd.f32 %v2199, 1e-05
    %v2204 = vadd.f32 %v2200, 1e-05
    %v2205 = vrsqrt.pop %v2201
    %v2206 = vrsqrt.pop %v2202
    %v2207 = vrsqrt.pop %v2203
    %v2208 = vrsqrt.pop %v2204
    %v2209 = vmul.f32 %v2181, %v2205
    %v2210 = vmul.f32 %v2182, %v2206
    %v2211 = vmul.f32 %v2183, %v2207
    %v2212 = vmul.f32 %v2184, %v2208
    %v2214 = vlaneseq
    %v2215 = vshrl.u32 %v2214, 7
    %v2216 = vsub.s32 0, %v2215
    %v2217 = vrot.slane %v2167, %v2216
    %v2219 = vmul.f32 %v2209, %v2217
    %v2220 = vmul.f32 %v2210, %v2217
    %v2221 = vmul.f32 %v2211, %v2217
    %v2222 = vmul.f32 %v2212, %v2217
    %v2224 = vlaneseq
    %v2225 = vshrl.u32 %v2224, 7
    %v2226 = vsub.s32 0, %v2225
    %v2227 = vrot.slane %v2168, %v2226
    %v2229 = vadd.f32 %v2219, %v2227
    %v2230 = vadd.f32 %v2220, %v2227
    %v2231 = vadd.f32 %v2221, %v2227
    %v2232 = vadd.f32 %v2222, %v2227
    %v2233 = vpack.c.bf16 %v2230, %v2229
    %v2234 = vpack.c.bf16 %v2232, %v2231
    %v2235 = vld [vmem:[#allocation14] sm:$0xf]
    %v2236 = vld [vmem:[#allocation14 + $0x4] sm:$0xf]
    %v2237 = vld [vmem:[#allocation14 + $0x8] sm:$0xf]
    %v2238 = vld [vmem:[#allocation14 + $0xc] sm:$0xf]
    %v2239 = vld [vmem:[#allocation14 + $0x10] sm:$0xf]
    %v2240 = vld [vmem:[#allocation14 + $0x14] sm:$0xf]
    %v2241 = vld [vmem:[#allocation14 + $0x18] sm:$0xf]
    %v2242 = vld [vmem:[#allocation14 + $0x1c] sm:$0xf]
    %v2243 = vld [vmem:[#allocation14 + $0x20] sm:$0xf]
    %v2244 = vld [vmem:[#allocation14 + $0x24] sm:$0xf]
    %v2245 = vld [vmem:[#allocation14 + $0x28] sm:$0xf]
    %v2246 = vld [vmem:[#allocation14 + $0x2c] sm:$0xf]
    %v2247 = vld [vmem:[#allocation14 + $0x30] sm:$0xf]
    %v2248 = vld [vmem:[#allocation14 + $0x34] sm:$0xf]
    %v2249 = vld [vmem:[#allocation14 + $0x38] sm:$0xf]
    %v2250 = vld [vmem:[#allocation14 + $0x3c] sm:$0xf]
    %v2251 = vld [vmem:[%s17] sm:$0x1]
    %v2253 = vlaneseq
    %v2254 = vshrl.u32 %v2253, 7
    %v2255 = vsub.s32 0, %v2254
    %v2256 = vrot.slane %v2251, %v2255
    %v2274 = vunpack.c.l.b16 %v2235
    %v2275 = vunpack.c.l.b16 %v2236
    %v2276 = vunpack.c.l.b16 %v2237
    %v2277 = vunpack.c.l.b16 %v2238
    %v2278 = vunpack.c.l.b16 %v2239
    %v2279 = vunpack.c.l.b16 %v2240
    %v2280 = vunpack.c.l.b16 %v2241
    %v2281 = vunpack.c.l.b16 %v2242
    %v2282 = vunpack.c.l.b16 %v2243
    %v2283 = vunpack.c.l.b16 %v2244
    %v2284 = vunpack.c.l.b16 %v2245
    %v2285 = vunpack.c.l.b16 %v2246
    %v2286 = vunpack.c.l.b16 %v2247
    %v2287 = vunpack.c.l.b16 %v2248
    %v2288 = vunpack.c.l.b16 %v2249
    %v2289 = vunpack.c.l.b16 %v2250
    %v2290 = vpack.c.b16 %v2275, %v2274
    %v2291 = vpack.c.b16 %v2277, %v2276
    %v2292 = vpack.c.b16 %v2279, %v2278
    %v2293 = vpack.c.b16 %v2281, %v2280
    %v2294 = vpack.c.b16 %v2283, %v2282
    %v2295 = vpack.c.b16 %v2285, %v2284
    %v2296 = vpack.c.b16 %v2287, %v2286
    %v2297 = vpack.c.b16 %v2289, %v2288
    %2306 = vmatprep.subr.bf16.mxu0 0
    %2307 = vmatpush1.bf16.msra.mxu0 %v2290
    %2308 = vmatprep.subr.bf16.mxu0 0
    %2309 = vmatpush1.bf16.msra.mxu0 %v2291
    %2310 = vmatprep.subr.bf16.mxu0 0
    %2311 = vmatpush1.bf16.msra.mxu0 %v2292
    %2312 = vmatprep.subr.bf16.mxu0 0
    %2313 = vmatpush1.bf16.msra.mxu0 %v2293
    %2314 = vmatprep.subr.bf16.mxu0 0
    %2315 = vmatpush1.bf16.msra.mxu0 %v2294
    %2316 = vmatprep.subr.bf16.mxu0 0
    %2317 = vmatpush1.bf16.msra.mxu0 %v2295
    %2318 = vmatprep.subr.bf16.mxu0 0
    %2319 = vmatpush1.bf16.msra.mxu0 %v2296
    %2320 = vmatprep.subr.bf16.mxu0 0
    %2321 = vmatpush1.bf16.msra.mxu0 %v2297
    %2322 = vmatprep.subr.bf16.mxu0 0
    %2323 = vmatpush1.bf16.msra.mxu0 0
    %2324 = vmatprep.subr.bf16.mxu0 0
    %2325 = vmatpush1.bf16.msra.mxu0 0
    %2326 = vmatprep.subr.bf16.mxu0 0
    %2327 = vmatpush1.bf16.msra.mxu0 0
    %2328 = vmatprep.subr.bf16.mxu0 0
    %2329 = vmatpush1.bf16.msra.mxu0 0
    %2330 = vmatprep.subr.bf16.mxu0 0
    %2331 = vmatpush1.bf16.msra.mxu0 0
    %2332 = vmatprep.subr.bf16.mxu0 0
    %2333 = vmatpush1.bf16.msra.mxu0 0
    %2334 = vmatprep.subr.bf16.mxu0 0
    %2335 = vmatpush1.bf16.msra.mxu0 0
    %2336 = vmatprep.subr.bf16.mxu0 0
    %2337 = vmatpush1.bf16.msra.mxu0 0
    %2338 = vmatprep.mubr.bf16.mxu0 0
    %2339 = vmatmul.mubr.bf16.gmra.mrb[0].mxu0 %v2233
    %v2340 = vpop.f32.mrb[0].mxu0
    %v2341 = vadd.f32 %v2256, %v2340
    %v2342 = vpop.f32.mrb[0].mxu0
    %v2343 = vpop.f32.mrb[0].mxu0
    %v2344 = vadd.f32 %v2256, %v2343
    %v2345 = vpop.f32.mrb[0].mxu0
    %2346 = vmatprep.mubr.bf16.mxu0 0
    %2347 = vmatmul.mubr.bf16.gmra.mrb[0].mxu0 %v2234
    %v2348 = vpop.f32.mrb[0].mxu0
    %v2349 = vadd.f32 %v2256, %v2348
    %v2350 = vpop.f32.mrb[0].mxu0
    %v2351 = vpop.f32.mrb[0].mxu0
    %v2352 = vadd.f32 %v2256, %v2351
    %v2353 = vpop.f32.mrb[0].mxu0
    %2354 = vdwg.mxu0
    %2355 = vst [vmem:[#allocation16] sm:$0xff] %v2341
    %2356 = vst [vmem:[#allocation16 + $0x8] sm:$0xff] %v2344
    %2357 = vst [vmem:[#allocation16 + $0x10] sm:$0xff] %v2349
    %2358 = vst [vmem:[#allocation16 + $0x18] sm:$0xff] %v2352
    // Predicated region
    $region106: #{tpu_custom_call.1} parent=1 // pred_check
      _
    $region107: #{tpu_custom_call.1} parent=1 // pred_check_branch
      %2360 = sbr.rel (0) target = $region109
    $region108: #{tpu_custom_call.1} parent=1 // pred_region
      %s2362 = ssub.s32 512, 512
      %2363 = vsyncadd [#allocation4], %s2362
      %s2364 = sshll.u32 [#allocation16], 4
      %s2365 = int_to_ptr.vmem [resolvable:$true] %s2364
      %2370 = dma.vmem_to_hbm [thread:$0]  %s2365, 512, %s18, [#allocation4], 128, 128, 8
    $region109: #{tpu_custom_call.1} parent=1 // pred_fallthru
      _
    // Predicated region
    $region110: #{tpu_custom_call.1} parent=1 // pred_check
      _
    $region111: #{tpu_custom_call.1} parent=1 // pred_check_branch
      %2372 = sbr.rel (0) target = $region113
    $region112: #{tpu_custom_call.1} parent=1 // pred_region
      %2373 = dma.done [#allocation4], 512
    $region113: #{tpu_custom_call.1} parent=1 // pred_fallthru
      _
    %2374 = vsyncpa [#allocation3], 1
    %2375 = vsyncpa [#allocation6], 1
    %2376 = vsyncpa [#allocation9], 1
    %2377 = vsyncpa [#allocation12], 1
    %2378 = vsyncpa [#allocation15], 1
    %2379 = vsyncpa [#allocation4], 1

</llo_original>
